<compile_context>
chip_gen: v5e
topology: v5e:2x2
jax: 0.10.0
libtpu: 0.0.40
codegen_flags: <defaults>
</compile_context>

<pallas_src>
import functools

import numpy as np
import jax
import jax.numpy as jnp
from jax import lax
from jax.experimental import pallas as pl
from jax.experimental.pallas import tpu as pltpu

_BN_EPS = 1e-5
_VMEM_LIMIT = 48 * 1024 * 1024     # <= v7x physical VMEM (64 MiB), > default scoped


def _lane_tile(n, k_rows, bytes_per_el=2, cap=2048, budget=8 * 1024 * 1024):
    """Largest multiple-of-128 lane tile dividing n (VMEM-budgeted); else full n."""
    cap = min(cap, max(128, budget // max(1, k_rows * bytes_per_el * 3)))
    t = (min(cap, n) // 128) * 128
    while t >= 128:
        if n % t == 0:
            return t
        t -= 128
    return n   # full extent is a legal block dim; TODO(synk): pad+mask instead.


# ----------------------------------------------------------------------------
# Kernel 1: conv1 as one deep-K lane-dense GEMM with fused bias+BN1+ReLU.
#   out (Cout, TM) = W (Cout, K) @ patches (K, TM), spatial rows on lanes.
# ----------------------------------------------------------------------------
def _conv_bn_relu_kernel(p_ref, w_ref, sc_ref, sh_ref, o_ref):
    acc = jnp.dot(w_ref[...], p_ref[...], preferred_element_type=jnp.float32)
    o_ref[...] = jnp.maximum(acc * sc_ref[...] + sh_ref[...], 0.0).astype(o_ref.dtype)


def conv_bn_relu(p, w_t, scale, shift, out_dtype=jnp.bfloat16):
    # p: (N, K, Ms) bf16, w_t: (Cout, K) bf16, scale/shift: (Cout, 1) f32
    N, K, Ms = p.shape
    Cout = w_t.shape[0]
    TM = _lane_tile(Ms, K)
    return pl.pallas_call(
        _conv_bn_relu_kernel,
        out_shape=jax.ShapeDtypeStruct((N, Cout, Ms), out_dtype),
        grid=(N, Ms // TM),
        in_specs=[pl.BlockSpec((None, K, TM), lambda n, m: (n, 0, m)),
                  pl.BlockSpec((Cout, K), lambda n, m: (0, 0)),
                  pl.BlockSpec((Cout, 1), lambda n, m: (0, 0)),
                  pl.BlockSpec((Cout, 1), lambda n, m: (0, 0))],
        out_specs=pl.BlockSpec((None, Cout, TM), lambda n, m: (n, 0, m)),
        compiler_params=pltpu.CompilerParams(
            dimension_semantics=("parallel", "parallel"),
            vmem_limit_bytes=_VMEM_LIMIT),
    )(p, w_t, scale, shift)


# ----------------------------------------------------------------------------
# Kernel 2: conv2 GEMM + folded 1x1 shortcut (conv3+bias+BN2) + residual add
#   + SE global-average-pool partial sums.  Grid = (batch, chunk, inner);
#   inner is the "arbitrary" accumulation axis for the per-chunk pooled sums.
# ----------------------------------------------------------------------------
def _conv_shortcut_sum_kernel(p_ref, xs_ref, w2_ref, w3_ref, sc2_ref, sh_ref,
                              z_ref, sum_ref):
    y = jnp.dot(w2_ref[...], p_ref[...], preferred_element_type=jnp.float32)
    s = jnp.dot(w3_ref[...], xs_ref[...], preferred_element_type=jnp.float32)
    y = y + s * sc2_ref[...] + sh_ref[...]          # conv2+b2 + BN2(conv3(x)+b3)
    z_ref[...] = y

    @pl.when(pl.program_id(2) == 0)
    def _():
        sum_ref[...] = jnp.zeros_like(sum_ref)

    sum_ref[...] += jnp.sum(y, axis=1, keepdims=True)


def conv_shortcut_residual_sum(p, xs, w2_t, w3_t, sc2, shift):
    # p: (N, K, Ms) bf16, xs: (N, Cin, Ms) bf16, w2_t: (Cout, K), w3_t: (Cout, Cin)
    N, K, Ms = p.shape
    Cin = xs.shape[1]
    Cout = w2_t.shape[0]
    TM = _lane_tile(Ms, K)
    n_tiles = Ms // TM
    n_chunks = 2 if (n_tiles % 2 == 0 and n_tiles >= 2) else 1   # v7x dual-TC split
    n_inner = n_tiles // n_chunks
    m_idx = lambda n, c, i: (n, 0, c * n_inner + i)
    return pl.pallas_call(
        _conv_shortcut_sum_kernel,
        out_shape=(jax.ShapeDtypeStruct((N, Cout, Ms), jnp.float32),
                   jax.ShapeDtypeStruct((N, n_chunks, Cout, 1), jnp.float32)),
        grid=(N, n_chunks, n_inner),
        in_specs=[pl.BlockSpec((None, K, TM), m_idx),
                  pl.BlockSpec((None, Cin, TM), m_idx),
                  pl.BlockSpec((Cout, K), lambda n, c, i: (0, 0)),
                  pl.BlockSpec((Cout, Cin), lambda n, c, i: (0, 0)),
                  pl.BlockSpec((Cout, 1), lambda n, c, i: (0, 0)),
                  pl.BlockSpec((Cout, 1), lambda n, c, i: (0, 0))],
        out_specs=(pl.BlockSpec((None, Cout, TM), m_idx),
                   pl.BlockSpec((None, None, Cout, 1),
                                lambda n, c, i: (n, c, 0, 0))),
        compiler_params=pltpu.CompilerParams(
            dimension_semantics=("parallel", "parallel", "arbitrary"),
            vmem_limit_bytes=_VMEM_LIMIT),
    )(p, xs, w2_t, w3_t, sc2, shift)


# ----------------------------------------------------------------------------
# Kernel 3: SE channel scaling — pure VPU multiply over lane-dense tiles.
# (The tiny SE MLP itself is hoisted out of the per-tile path.)
# ----------------------------------------------------------------------------
def _se_scale_kernel(z_ref, a_ref, o_ref):
    o_ref[...] = z_ref[...] * a_ref[...]


def se_scale(z, attn):
    N, Cout, Ms = z.shape
    TM = _lane_tile(Ms, Cout, bytes_per_el=4)
    return pl.pallas_call(
        _se_scale_kernel,
        out_shape=jax.ShapeDtypeStruct((N, Cout, Ms), jnp.float32),
        grid=(N, Ms // TM),
        in_specs=[pl.BlockSpec((None, Cout, TM), lambda n, m: (n, 0, m)),
                  pl.BlockSpec((None, Cout, 1), lambda n, m: (n, 0, 0))],
        out_specs=pl.BlockSpec((None, Cout, TM), lambda n, m: (n, 0, m)),
        compiler_params=pltpu.CompilerParams(
            dimension_semantics=("parallel", "parallel"),
            vmem_limit_bytes=_VMEM_LIMIT),
    )(z, attn)


# ----------------------------------------------------------------------------
# Wrapper glue (layout only): channels-first im2col, BN folding, weight
# reshapes.  No activation-volume transposes — output is already NCDHW.
# ----------------------------------------------------------------------------
def _im2col_3d_cf(x, K, stride, pad):
    # x: (N, C, D, H, W) -> (N, K^3*C, Ms), feature order (kd, kh, kw, c)
    # TODO(synk): move this gather into the kernel (halo DMA) to avoid the
    #             27x patch expansion through HBM.
    N, C, D, H, W = x.shape
    xp = jnp.pad(x, ((0, 0), (0, 0), (pad, pad), (pad, pad), (pad, pad)))
    Do = (D + 2 * pad - K) // stride + 1
    Ho = (H + 2 * pad - K) // stride + 1
    Wo = (W + 2 * pad - K) // stride + 1
    cols = []
    for kd in range(K):
        for kh in range(K):
            for kw in range(K):
                cols.append(xp[:, :,
                               kd:kd + (Do - 1) * stride + 1:stride,
                               kh:kh + (Ho - 1) * stride + 1:stride,
                               kw:kw + (Wo - 1) * stride + 1:stride])
    p = jnp.stack(cols, axis=1)                      # (N, K^3, C, Do, Ho, Wo)
    return p.reshape(N, K * K * K * C, Do * Ho * Wo), (Do, Ho, Wo)


def _w_flat_t(w):
    # torch (O, I, KD, KH, KW) -> (O, KD*KH*KW*I), matching patch feature order
    O, I, KD, KH, KW = w.shape
    return jnp.transpose(w, (0, 2, 3, 4, 1)).reshape(O, KD * KH * KW * I)


def _bn_fold(gamma, beta, mean, var):
    sc = gamma / jnp.sqrt(var + _BN_EPS)
    return sc, beta - mean * sc


@functools.partial(jax.jit, static_argnames=("stride",))
def stem_block3d_pallas(x_ncdhw, P, stride):
    x = x_ncdhw.astype(jnp.bfloat16)                 # channels-first throughout
    N, Cin, D, H, W = x.shape
    Cout = P['conv1_w'].shape[0]

    sc1, sh1 = _bn_fold(*P['bn1'])                   # BN after conv1
    sc2, sh2 = _bn_fold(*P['bn2'])                   # BN after conv3 (shortcut)
    col = lambda v: v.astype(jnp.float32).reshape(Cout, 1)

    # --- conv1 (3x3x3, stride, pad=1) + bias + BN1 + ReLU: one deep-K GEMM
    p1, (Do, Ho, Wo) = _im2col_3d_cf(x, 3, stride, 1)
    Ms = Do * Ho * Wo
    a1 = conv_bn_relu(p1, _w_flat_t(P['conv1_w']).astype(jnp.bfloat16),
                      col(sc1), col(P['conv1_b'] * sc1 + sh1))   # (N, Cout, Ms) bf16

    # --- conv2 (3x3x3, pad=1) + bias, folded 1x1 shortcut (conv3+bias+BN2),
    #     residual add and SE pooled partial sums in a single kernel pass.
    p2, _ = _im2col_3d_cf(a1.reshape(N, Cout, Do, Ho, Wo), 3, 1, 1)
    xs = x[:, :, ::stride, ::stride, ::stride].reshape(N, Cin, Ms)
    shift2 = P['conv2_b'] + P['conv3_b'] * sc2 + sh2
    z, sums = conv_shortcut_residual_sum(
        p2, xs,
        _w_flat_t(P['conv2_w']).astype(jnp.bfloat16),
        P['conv3_w'].reshape(Cout, Cin).astype(jnp.bfloat16),
        col(sc2), col(shift2))

    # --- SE attention: tiny (N, C) MLP hoisted out of the per-tile path.
    pooled = jnp.sum(sums[..., 0], axis=1) / float(Ms)           # (N, Cout)
    h = jnp.maximum(pooled @ P['se_w1'].T, 0.0)
    attn = jax.nn.sigmoid(h @ P['se_w2'].T).reshape(N, Cout, 1)

    # --- channel scaling (lane-dense VPU pass)
    out = se_scale(z, attn)
    return out.reshape(N, Cout, Do, Ho, Wo)                      # NCDHW


# --------------------------- pure-JAX reference ----------------------------
def _ref_conv(x, w, b, stride, padding):
    out = lax.conv_general_dilated(
        x, w, window_strides=(stride,) * 3, padding=[(padding, padding)] * 3,
        dimension_numbers=('NCDHW', 'OIDHW', 'NCDHW'),
        precision=lax.Precision.HIGHEST)
    return out + b[None, :, None, None, None]


def stem_block3d_reference(x, P, stride):
    def bn(z, g, b, m, v):
        g, b, m, v = (t[None, :, None, None, None] for t in (g, b, m, v))
        return (z - m) / jnp.sqrt(v + _BN_EPS) * g + b
    y = _ref_conv(x, P['conv1_w'], P['conv1_b'], stride, 1)
    y = jax.nn.relu(bn(y, *P['bn1']))
    y = _ref_conv(y, P['conv2_w'], P['conv2_b'], 1, 1)
    s = bn(_ref_conv(x, P['conv3_w'], P['conv3_b'], stride, 0), *P['bn2'])
    z = y + s
    pooled = jnp.mean(z, axis=(2, 3, 4))
    h = jax.nn.relu(pooled @ P['se_w1'].T)
    att = jax.nn.sigmoid(h @ P['se_w2'].T)
    return z * att[:, :, None, None, None]


if __name__ == "__main__":
    key = jax.random.PRNGKey(0)
    N, in_c, out_c, stride = 2, 8, 16, 2
    D = H = W = 8
    ks = list(jax.random.split(key, 12))

    def nrm(k, shape, scale=0.1):
        return scale * jax.random.normal(k, shape, dtype=jnp.float32)

    def bn_params(k, c):
        k1, k2, k3, k4 = jax.random.split(k, 4)
        return (1.0 + nrm(k1, (c,)), nrm(k2, (c,)), nrm(k3, (c,)),
                jax.random.uniform(k4, (c,), jnp.float32, 0.5, 1.5))

    P = {
        'conv1_w': nrm(ks[0], (out_c, in_c, 3, 3, 3)),
        'conv1_b': nrm(ks[1], (out_c,)),
        'bn1': bn_params(ks[2], out_c),
        'conv2_w': nrm(ks[3], (out_c, out_c, 3, 3, 3)),
        'conv2_b': nrm(ks[4], (out_c,)),
        'conv3_w': nrm(ks[5], (out_c, in_c, 1, 1, 1)),
        'conv3_b': nrm(ks[6], (out_c,)),
        'bn2': bn_params(ks[7], out_c),
        'se_w1': nrm(ks[8], (out_c // 8, out_c)),   # torch Linear (out, in)
        'se_w2': nrm(ks[9], (out_c, out_c // 8)),
    }

    x = jax.random.normal(ks[10], (N, in_c, D, H, W), dtype=jnp.float32)  # NCDHW

    out = jax.block_until_ready(stem_block3d_pallas(x, P, stride))
    ref = stem_block3d_reference(x, P, stride)
    # bf16 matmul operands (f32 accumulation) vs. f32-HIGHEST reference.
    np.testing.assert_allclose(np.asarray(out, np.float32), np.asarray(ref),
                               rtol=5e-2, atol=5e-2)
    print("KERNEL_OK")
</pallas_src>

<mosaic_0001>
module attributes {stable_mosaic.version = 11 : i64} {
  func.func @_conv_bn_relu_kernel(%arg0: i32, %arg1: i32, %arg2: memref<1x216x64xbf16, #tpu.memory_space<vmem>>, %arg3: memref<16x216xbf16, #tpu.memory_space<vmem>>, %arg4: memref<16x1xf32, #tpu.memory_space<vmem>>, %arg5: memref<16x1xf32, #tpu.memory_space<vmem>>, %arg6: memref<1x16x64xbf16, #tpu.memory_space<vmem>>) attributes {dimension_semantics = [#tpu.dimension_semantics<parallel>, #tpu.dimension_semantics<parallel>], iteration_bounds = array<i64: 2, 1>, scalar_prefetch = 0 : i64, scratch_operands = 0 : i64, tpu.core_type = #tpu.core_type<tc>, window_params = [{transform_indices = @transform_0, window_bounds = array<i64: 1, 216, 64>}, {pipeline_mode = #tpu.pipeline_mode<synchronous>, transform_indices = @transform_1, window_bounds = array<i64: 16, 216>}, {pipeline_mode = #tpu.pipeline_mode<synchronous>, transform_indices = @transform_2, window_bounds = array<i64: 16, 1>}, {pipeline_mode = #tpu.pipeline_mode<synchronous>, transform_indices = @transform_3, window_bounds = array<i64: 16, 1>}, {transform_indices = @transform_4, window_bounds = array<i64: 1, 16, 64>}]} {
    %c0 = arith.constant 0 : index
    %c0_0 = arith.constant 0 : index
    %0 = vector.load %arg3[%c0, %c0_0] : memref<16x216xbf16, #tpu.memory_space<vmem>>, vector<16x216xbf16>
    %c0_1 = arith.constant 0 : index
    %c0_2 = arith.constant 0 : index
    %c0_3 = arith.constant 0 : index
    %1 = vector.load %arg2[%c0_1, %c0_2, %c0_3] : memref<1x216x64xbf16, #tpu.memory_space<vmem>>, vector<1x216x64xbf16>
    %2 = vector.shape_cast %1 : vector<1x216x64xbf16> to vector<216x64xbf16>
    %cst = arith.constant dense<0.000000e+00> : vector<16x64xf32>
    %3 = tpu.matmul %0, %2, %cst {dimension_numbers = #tpu.dot_dimension_numbers<[1], [0], [0], [1], [0, 0, 1, 1], [], []>} : vector<16x216xbf16>, vector<216x64xbf16>, vector<16x64xf32> -> vector<16x64xf32>
    %c0_4 = arith.constant 0 : index
    %c0_5 = arith.constant 0 : index
    %4 = vector.load %arg4[%c0_4, %c0_5] : memref<16x1xf32, #tpu.memory_space<vmem>>, vector<16x1xf32>
    %5 = vector.broadcast %4 : vector<16x1xf32> to vector<16x64xf32>
    %6 = arith.mulf %3, %5 : vector<16x64xf32>
    %c0_6 = arith.constant 0 : index
    %c0_7 = arith.constant 0 : index
    %7 = vector.load %arg5[%c0_6, %c0_7] : memref<16x1xf32, #tpu.memory_space<vmem>>, vector<16x1xf32>
    %8 = vector.broadcast %7 : vector<16x1xf32> to vector<16x64xf32>
    %9 = arith.addf %6, %8 : vector<16x64xf32>
    %cst_8 = arith.constant 0.000000e+00 : f32
    %10 = vector.broadcast %cst_8 : f32 to vector<16x64xf32>
    %11 = arith.maximumf %9, %10 : vector<16x64xf32>
    %12 = arith.truncf %11 : vector<16x64xf32> to vector<16x64xbf16>
    %c0_9 = arith.constant 0 : index
    %c0_10 = arith.constant 0 : index
    %c0_11 = arith.constant 0 : index
    %13 = vector.load %arg6[%c0_9, %c0_10, %c0_11] : memref<1x16x64xbf16, #tpu.memory_space<vmem>>, vector<1x16x64xbf16>
    %14 = vector.shape_cast %13 : vector<1x16x64xbf16> to vector<16x64xbf16>
    %15 = vector.shape_cast %12 : vector<16x64xbf16> to vector<1x16x64xbf16>
    tpu.vector_store %arg6[%c0_9, %c0_10, %c0_11], %15 {strides = array<i32>} : memref<1x16x64xbf16, #tpu.memory_space<vmem>>, vector<1x16x64xbf16>,
    return
  }
  func.func @transform_0(%arg0: i32, %arg1: i32) -> (i32, i32, i32) {
    %c0_i32 = arith.constant 0 : i32
    %c0_i32_0 = arith.constant 0 : i32
    return %arg0, %c0_i32, %arg1 : i32, i32, i32
  }
  func.func @transform_1(%arg0: i32, %arg1: i32) -> (i32, i32) {
    %c0_i32 = arith.constant 0 : i32
    %c0_i32_0 = arith.constant 0 : i32
    %c0_i32_1 = arith.constant 0 : i32
    return %c0_i32, %c0_i32_0 : i32, i32
  }
  func.func @transform_2(%arg0: i32, %arg1: i32) -> (i32, i32) {
    %c0_i32 = arith.constant 0 : i32
    %c0_i32_0 = arith.constant 0 : i32
    %c0_i32_1 = arith.constant 0 : i32
    return %c0_i32, %c0_i32_0 : i32, i32
  }
  func.func @transform_3(%arg0: i32, %arg1: i32) -> (i32, i32) {
    %c0_i32 = arith.constant 0 : i32
    %c0_i32_0 = arith.constant 0 : i32
    %c0_i32_1 = arith.constant 0 : i32
    return %c0_i32, %c0_i32_0 : i32, i32
  }
  func.func @transform_4(%arg0: i32, %arg1: i32) -> (i32, i32, i32) {
    %c0_i32 = arith.constant 0 : i32
    %c0_i32_0 = arith.constant 0 : i32
    return %arg0, %c0_i32, %arg1 : i32, i32, i32
  }
}

module attributes {stable_mosaic.version = 11 : i64} {
  func.func @_conv_shortcut_sum_kernel(%arg0: i32, %arg1: i32, %arg2: i32, %arg3: memref<1x432x64xbf16, #tpu.memory_space<vmem>>, %arg4: memref<1x8x64xbf16, #tpu.memory_space<vmem>>, %arg5: memref<16x432xbf16, #tpu.memory_space<vmem>>, %arg6: memref<16x8xbf16, #tpu.memory_space<vmem>>, %arg7: memref<16x1xf32, #tpu.memory_space<vmem>>, %arg8: memref<16x1xf32, #tpu.memory_space<vmem>>, %arg9: memref<1x16x64xf32, #tpu.memory_space<vmem>>, %arg10: memref<1x1x16x1xf32, #tpu.memory_space<vmem>>) attributes {dimension_semantics = [#tpu.dimension_semantics<parallel>, #tpu.dimension_semantics<parallel>, #tpu.dimension_semantics<arbitrary>], iteration_bounds = array<i64: 2, 1, 1>, scalar_prefetch = 0 : i64, scratch_operands = 0 : i64, tpu.core_type = #tpu.core_type<tc>, window_params = [{transform_indices = @transform_0, window_bounds = array<i64: 1, 432, 64>}, {transform_indices = @transform_1, window_bounds = array<i64: 1, 8, 64>}, {pipeline_mode = #tpu.pipeline_mode<synchronous>, transform_indices = @transform_2, window_bounds = array<i64: 16, 432>}, {pipeline_mode = #tpu.pipeline_mode<synchronous>, transform_indices = @transform_3, window_bounds = array<i64: 16, 8>}, {pipeline_mode = #tpu.pipeline_mode<synchronous>, transform_indices = @transform_4, window_bounds = array<i64: 16, 1>}, {pipeline_mode = #tpu.pipeline_mode<synchronous>, transform_indices = @transform_5, window_bounds = array<i64: 16, 1>}, {transform_indices = @transform_6, window_bounds = array<i64: 1, 16, 64>}, {transform_indices = @transform_7, window_bounds = array<i64: 1, 1, 16, 1>}]} {
    %c0 = arith.constant 0 : index
    %c0_0 = arith.constant 0 : index
    %0 = vector.load %arg5[%c0, %c0_0] : memref<16x432xbf16, #tpu.memory_space<vmem>>, vector<16x432xbf16>
    %c0_1 = arith.constant 0 : index
    %c0_2 = arith.constant 0 : index
    %c0_3 = arith.constant 0 : index
    %1 = vector.load %arg3[%c0_1, %c0_2, %c0_3] : memref<1x432x64xbf16, #tpu.memory_space<vmem>>, vector<1x432x64xbf16>
    %2 = vector.shape_cast %1 : vector<1x432x64xbf16> to vector<432x64xbf16>
    %cst = arith.constant dense<0.000000e+00> : vector<16x64xf32>
    %3 = tpu.matmul %0, %2, %cst {dimension_numbers = #tpu.dot_dimension_numbers<[1], [0], [0], [1], [0, 0, 1, 1], [], []>} : vector<16x432xbf16>, vector<432x64xbf16>, vector<16x64xf32> -> vector<16x64xf32>
    %c0_4 = arith.constant 0 : index
    %c0_5 = arith.constant 0 : index
    %4 = vector.load %arg6[%c0_4, %c0_5] : memref<16x8xbf16, #tpu.memory_space<vmem>>, vector<16x8xbf16>
    %c0_6 = arith.constant 0 : index
    %c0_7 = arith.constant 0 : index
    %c0_8 = arith.constant 0 : index
    %5 = vector.load %arg4[%c0_6, %c0_7, %c0_8] : memref<1x8x64xbf16, #tpu.memory_space<vmem>>, vector<1x8x64xbf16>
    %6 = vector.shape_cast %5 : vector<1x8x64xbf16> to vector<8x64xbf16>
    %cst_9 = arith.constant dense<0.000000e+00> : vector<16x64xf32>
    %7 = tpu.matmul %4, %6, %cst_9 {dimension_numbers = #tpu.dot_dimension_numbers<[1], [0], [0], [1], [0, 0, 1, 1], [], []>} : vector<16x8xbf16>, vector<8x64xbf16>, vector<16x64xf32> -> vector<16x64xf32>
    %c0_10 = arith.constant 0 : index
    %c0_11 = arith.constant 0 : index
    %8 = vector.load %arg7[%c0_10, %c0_11] : memref<16x1xf32, #tpu.memory_space<vmem>>, vector<16x1xf32>
    %9 = vector.broadcast %8 : vector<16x1xf32> to vector<16x64xf32>
    %10 = arith.mulf %7, %9 : vector<16x64xf32>
    %11 = arith.addf %3, %10 : vector<16x64xf32>
    %c0_12 = arith.constant 0 : index
    %c0_13 = arith.constant 0 : index
    %12 = vector.load %arg8[%c0_12, %c0_13] : memref<16x1xf32, #tpu.memory_space<vmem>>, vector<16x1xf32>
    %13 = vector.broadcast %12 : vector<16x1xf32> to vector<16x64xf32>
    %14 = arith.addf %11, %13 : vector<16x64xf32>
    %c0_14 = arith.constant 0 : index
    %c0_15 = arith.constant 0 : index
    %c0_16 = arith.constant 0 : index
    %15 = vector.load %arg9[%c0_14, %c0_15, %c0_16] : memref<1x16x64xf32, #tpu.memory_space<vmem>>, vector<1x16x64xf32>
    %16 = vector.shape_cast %15 : vector<1x16x64xf32> to vector<16x64xf32>
    %17 = vector.shape_cast %14 : vector<16x64xf32> to vector<1x16x64xf32>
    tpu.vector_store %arg9[%c0_14, %c0_15, %c0_16], %17 {strides = array<i32>} : memref<1x16x64xf32, #tpu.memory_space<vmem>>, vector<1x16x64xf32>,
    %c0_i32 = arith.constant 0 : i32
    %18 = arith.cmpi eq, %arg2, %c0_i32 : i32
    %19 = arith.extui %18 : i1 to i32
    %c0_i32_17 = arith.constant 0 : i32
    %20 = arith.cmpi ne, %19, %c0_i32_17 : i32
    scf.if %20 {
      %cst_27 = arith.constant 0.000000e+00 : f32
      %29 = vector.broadcast %cst_27 : f32 to vector<16x1xf32>
      %c0_28 = arith.constant 0 : index
      %c0_29 = arith.constant 0 : index
      %c0_30 = arith.constant 0 : index
      %c0_31 = arith.constant 0 : index
      %30 = vector.load %arg10[%c0_28, %c0_29, %c0_30, %c0_31] : memref<1x1x16x1xf32, #tpu.memory_space<vmem>>, vector<1x1x16x1xf32>
      %31 = vector.shape_cast %30 : vector<1x1x16x1xf32> to vector<16x1xf32>
      %32 = vector.shape_cast %29 : vector<16x1xf32> to vector<1x1x16x1xf32>
      tpu.vector_store %arg10[%c0_28, %c0_29, %c0_30, %c0_31], %32 {strides = array<i32>} : memref<1x1x16x1xf32, #tpu.memory_space<vmem>>, vector<1x1x16x1xf32>,
    } else {
    }
    %c0_18 = arith.constant 0 : index
    %c0_19 = arith.constant 0 : index
    %c0_20 = arith.constant 0 : index
    %c0_21 = arith.constant 0 : index
    %21 = vector.load %arg10[%c0_18, %c0_19, %c0_20, %c0_21] : memref<1x1x16x1xf32, #tpu.memory_space<vmem>>, vector<1x1x16x1xf32>
    %22 = vector.shape_cast %21 : vector<1x1x16x1xf32> to vector<16x1xf32>
    %cst_22 = arith.constant dense<0.000000e+00> : vector<16xf32>
    %23 = vector.multi_reduction <add>, %14, %cst_22 [1] : vector<16x64xf32> to vector<16xf32>
    %24 = vector.shape_cast %23 : vector<16xf32> to vector<16x1xf32>
    %25 = arith.addf %22, %24 : vector<16x1xf32>
    %c0_23 = arith.constant 0 : index
    %c0_24 = arith.constant 0 : index
    %c0_25 = arith.constant 0 : index
    %c0_26 = arith.constant 0 : index
    %26 = vector.load %arg10[%c0_23, %c0_24, %c0_25, %c0_26] : memref<1x1x16x1xf32, #tpu.memory_space<vmem>>, vector<1x1x16x1xf32>
    %27 = vector.shape_cast %26 : vector<1x1x16x1xf32> to vector<16x1xf32>
    %28 = vector.shape_cast %25 : vector<16x1xf32> to vector<1x1x16x1xf32>
    tpu.vector_store %arg10[%c0_23, %c0_24, %c0_25, %c0_26], %28 {strides = array<i32>} : memref<1x1x16x1xf32, #tpu.memory_space<vmem>>, vector<1x1x16x1xf32>,
    return
  }
  func.func @transform_0(%arg0: i32, %arg1: i32, %arg2: i32) -> (i32, i32, i32) {
    %c1_i32 = arith.constant 1 : i32
    %0 = arith.muli %arg1, %c1_i32 : i32
    %1 = arith.addi %0, %arg2 : i32
    %c0_i32 = arith.constant 0 : i32
    %c0_i32_0 = arith.constant 0 : i32
    return %arg0, %c0_i32, %1 : i32, i32, i32
  }
  func.func @transform_1(%arg0: i32, %arg1: i32, %arg2: i32) -> (i32, i32, i32) {
    %c1_i32 = arith.constant 1 : i32
    %0 = arith.muli %arg1, %c1_i32 : i32
    %1 = arith.addi %0, %arg2 : i32
    %c0_i32 = arith.constant 0 : i32
    %c0_i32_0 = arith.constant 0 : i32
    return %arg0, %c0_i32, %1 : i32, i32, i32
  }
  func.func @transform_2(%arg0: i32, %arg1: i32, %arg2: i32) -> (i32, i32) {
    %c0_i32 = arith.constant 0 : i32
    %c0_i32_0 = arith.constant 0 : i32
    %c0_i32_1 = arith.constant 0 : i32
    return %c0_i32, %c0_i32_0 : i32, i32
  }
  func.func @transform_3(%arg0: i32, %arg1: i32, %arg2: i32) -> (i32, i32) {
    %c0_i32 = arith.constant 0 : i32
    %c0_i32_0 = arith.constant 0 : i32
    %c0_i32_1 = arith.constant 0 : i32
    return %c0_i32, %c0_i32_0 : i32, i32
  }
  func.func @transform_4(%arg0: i32, %arg1: i32, %arg2: i32) -> (i32, i32) {
    %c0_i32 = arith.constant 0 : i32
    %c0_i32_0 = arith.constant 0 : i32
    %c0_i32_1 = arith.constant 0 : i32
    return %c0_i32, %c0_i32_0 : i32, i32
  }
  func.func @transform_5(%arg0: i32, %arg1: i32, %arg2: i32) -> (i32, i32) {
    %c0_i32 = arith.constant 0 : i32
    %c0_i32_0 = arith.constant 0 : i32
    %c0_i32_1 = arith.constant 0 : i32
    return %c0_i32, %c0_i32_0 : i32, i32
  }
  func.func @transform_6(%arg0: i32, %arg1: i32, %arg2: i32) -> (i32, i32, i32) {
    %c1_i32 = arith.constant 1 : i32
    %0 = arith.muli %arg1, %c1_i32 : i32
    %1 = arith.addi %0, %arg2 : i32
    %c0_i32 = arith.constant 0 : i32
    %c0_i32_0 = arith.constant 0 : i32
    return %arg0, %c0_i32, %1 : i32, i32, i32
  }
  func.func @transform_7(%arg0: i32, %arg1: i32, %arg2: i32) -> (i32, i32, i32, i32) {
    %c0_i32 = arith.constant 0 : i32
    %c0_i32_0 = arith.constant 0 : i32
    %c0_i32_1 = arith.constant 0 : i32
    return %arg0, %arg1, %c0_i32, %c0_i32_0 : i32, i32, i32, i32
  }
}

module attributes {stable_mosaic.version = 11 : i64} {
  func.func @_se_scale_kernel(%arg0: i32, %arg1: i32, %arg2: memref<1x16x64xf32, #tpu.memory_space<vmem>>, %arg3: memref<1x16x1xf32, #tpu.memory_space<vmem>>, %arg4: memref<1x16x64xf32, #tpu.memory_space<vmem>>) attributes {dimension_semantics = [#tpu.dimension_semantics<parallel>, #tpu.dimension_semantics<parallel>], iteration_bounds = array<i64: 2, 1>, scalar_prefetch = 0 : i64, scratch_operands = 0 : i64, tpu.core_type = #tpu.core_type<tc>, window_params = [{transform_indices = @transform_0, window_bounds = array<i64: 1, 16, 64>}, {transform_indices = @transform_1, window_bounds = array<i64: 1, 16, 1>}, {transform_indices = @transform_2, window_bounds = array<i64: 1, 16, 64>}]} {
    %c0 = arith.constant 0 : index
    %c0_0 = arith.constant 0 : index
    %c0_1 = arith.constant 0 : index
    %0 = vector.load %arg2[%c0, %c0_0, %c0_1] : memref<1x16x64xf32, #tpu.memory_space<vmem>>, vector<1x16x64xf32>
    %1 = vector.shape_cast %0 : vector<1x16x64xf32> to vector<16x64xf32>
    %c0_2 = arith.constant 0 : index
    %c0_3 = arith.constant 0 : index
    %c0_4 = arith.constant 0 : index
    %2 = vector.load %arg3[%c0_2, %c0_3, %c0_4] : memref<1x16x1xf32, #tpu.memory_space<vmem>>, vector<1x16x1xf32>
    %3 = vector.shape_cast %2 : vector<1x16x1xf32> to vector<16x1xf32>
    %4 = vector.broadcast %3 : vector<16x1xf32> to vector<16x64xf32>
    %5 = arith.mulf %1, %4 : vector<16x64xf32>
    %c0_5 = arith.constant 0 : index
    %c0_6 = arith.constant 0 : index
    %c0_7 = arith.constant 0 : index
    %6 = vector.load %arg4[%c0_5, %c0_6, %c0_7] : memref<1x16x64xf32, #tpu.memory_space<vmem>>, vector<1x16x64xf32>
    %7 = vector.shape_cast %6 : vector<1x16x64xf32> to vector<16x64xf32>
    %8 = vector.shape_cast %5 : vector<16x64xf32> to vector<1x16x64xf32>
    tpu.vector_store %arg4[%c0_5, %c0_6, %c0_7], %8 {strides = array<i32>} : memref<1x16x64xf32, #tpu.memory_space<vmem>>, vector<1x16x64xf32>,
    return
  }
  func.func @transform_0(%arg0: i32, %arg1: i32) -> (i32, i32, i32) {
    %c0_i32 = arith.constant 0 : i32
    %c0_i32_0 = arith.constant 0 : i32
    return %arg0, %c0_i32, %arg1 : i32, i32, i32
  }
  func.func @transform_1(%arg0: i32, %arg1: i32) -> (i32, i32, i32) {
    %c0_i32 = arith.constant 0 : i32
    %c0_i32_0 = arith.constant 0 : i32
    %c0_i32_1 = arith.constant 0 : i32
    return %arg0, %c0_i32, %c0_i32_0 : i32, i32, i32
  }
  func.func @transform_2(%arg0: i32, %arg1: i32) -> (i32, i32, i32) {
    %c0_i32 = arith.constant 0 : i32
    %c0_i32_0 = arith.constant 0 : i32
    return %arg0, %c0_i32, %arg1 : i32, i32, i32
  }
}

</mosaic_0001>

<llo_original>
// kernel: stem_block3d_pallas.3
$region0: #{stem_block3d_pallas.3}
  #allocation0 [shape = 'u32[]', space=smem, size = 0x4, offset = 0x4, fixed_abs, tag = 'smem constant byte address 0x4 - core index']
  #allocation1 [shape = 'u32[72,128]{1,0:T(1,128)}', space=vmem, size = 0x9000, scoped, tag = 'internal scratch']
  %s0 = inlined_call_operand.vmem [shape: bf16[2,216,64], index: 0, kind: input, shape index: {}]
  %s1 = inlined_call_operand.vmem [shape: bf16[16,216], index: 1, kind: input, shape index: {}]
  %s2 = inlined_call_operand.vmem [shape: f32[16,1], index: 2, kind: input, shape index: {}]
  %s3 = inlined_call_operand.vmem [shape: f32[16,1], index: 3, kind: input, shape index: {}]
  %s4 = inlined_call_operand.vmem [shape: bf16[2,16,64], index: 4, kind: output, shape index: {}]
  %s5 = sld [smem:[#allocation0]]
  $region49: #{stem_block3d_pallas.3} parent=0
    _
  %s7 = ssub.s32 1, %s5
  %s8 = scalar_select 0, %s7, %s5
  loop: start=0, step=1, limit=4
  $region2: #{stem_block3d_pallas.3} parent=0 // loop_pre_header
    _
  $region3: #{stem_block3d_pallas.3} parent=0 // loop_header
    %s10 = sphi 0, %s14
    %p11 = scmp.ge.s32.totalorder %s10, 4
    %s17 = sphi 0, %s29
    %s18 = sphi 0, %s25
    %s19 = sphi 0, %s17
    %s20 = sphi 0, %s18
    %s21 = sphi 0, %s19
    %s22 = sphi 0, %s20
    %s34 = sphi 0, %s36
    %s37 = sphi 0, %s34
    %s38 = sphi 0, %s37
    %s54 = sphi 0, %s38
    %s58 = sphi 0, %s58
    %s60 = sphi 0, %s58
    %s61 = sphi 0, %s60
    %s75 = sphi 0, %s61
    %s79 = sphi 0, %s79
    %s81 = sphi 0, %s79
    %s82 = sphi 0, %s81
    %s96 = sphi 0, %s82
    %s100 = sphi 0, %s100
    %s102 = sphi 0, %s100
    %s103 = sphi 0, %s102
    %s117 = sphi 0, %s103
    %s125 = sphi 0, %s127
    %s128 = sphi 0, %s125
    %s129 = sphi 0, %s128
    %s145 = sphi 0, %s129
  $region4: #{stem_block3d_pallas.3} parent=0 // loop_header_branch
    %13 = sbr.rel (%p11) target = $region8
  $region5: #{stem_block3d_pallas.3} parent=0 // loop_body
    %s15 = ssub.s32 %s10, 1
    %s16 = ssub.s32 %s10, 2
    %s23 = sadd.s32 1, %s18
    %p24 = scmp.ge.s32.totalorder %s23, 1
    %s25 = scalar_select %p24, 0, %s23
    %s26 = sadd.s32 1, %s17
    %s27 = scalar_select %p24, %s26, %s17
    %p28 = scmp.ge.s32.totalorder %s27, 2
    %s29 = scalar_select %p28, 0, %s27
    %s30 = ssub.s32 %s17, %s29
    %s31 = ssub.s32 %s18, %s25
    %s32 = sor.u32 %s30, %s31
    %p33 = scmp.eq.s32.totalorder %s32, 0
    %s35 = sadd.s32 %s34, 1
    %s36 = scalar_select %p33, %s34, %s35
    %p39 = pneg %p33
    %p40 = scmp.eq.s32.totalorder %s10, 1
    %p41 = por %p39, %p40
    %p42 = scmp.ne.s32.totalorder %s34, %s37
    %p43 = scmp.eq.s32.totalorder %s10, 0
    %p44 = por %p42, %p43
    %p45 = scmp.ne.s32.totalorder %s34, %s37
    %p46 = scmp.eq.s32.totalorder %s15, 1
    %p47 = por %p45, %p46
    %p48 = scmp.ne.s32.totalorder %s37, %s38
    %p49 = scmp.eq.s32.totalorder %s15, 0
    %p50 = por %p48, %p49
    %p51 = scmp.ne.s32.totalorder %s37, %s38
    %p52 = scmp.eq.s32.totalorder %s16, 1
    %p53 = por %p51, %p52
    %p55 = scmp.ne.s32.totalorder %s38, %s54
    %p56 = scmp.eq.s32.totalorder %s16, 0
    %p57 = por %p55, %p56
    %s59 = sadd.s32 %s58, 1
    %p62 = scmp.eq.s32.totalorder %s10, 1
    %p63 = scmp.ne.s32.totalorder %s58, %s60
    %p64 = scmp.eq.s32.totalorder %s10, 0
    %p65 = por %p63, %p64
    %p66 = scmp.ne.s32.totalorder %s58, %s60
    %p67 = scmp.eq.s32.totalorder %s15, 1
    %p68 = por %p66, %p67
    %p69 = scmp.ne.s32.totalorder %s60, %s61
    %p70 = scmp.eq.s32.totalorder %s15, 0
    %p71 = por %p69, %p70
    %p72 = scmp.ne.s32.totalorder %s60, %s61
    %p73 = scmp.eq.s32.totalorder %s16, 1
    %p74 = por %p72, %p73
    %p76 = scmp.ne.s32.totalorder %s61, %s75
    %p77 = scmp.eq.s32.totalorder %s16, 0
    %p78 = por %p76, %p77
    %s80 = sadd.s32 %s79, 1
    %p83 = scmp.eq.s32.totalorder %s10, 1
    %p84 = scmp.ne.s32.totalorder %s79, %s81
    %p85 = scmp.eq.s32.totalorder %s10, 0
    %p86 = por %p84, %p85
    %p87 = scmp.ne.s32.totalorder %s79, %s81
    %p88 = scmp.eq.s32.totalorder %s15, 1
    %p89 = por %p87, %p88
    %p90 = scmp.ne.s32.totalorder %s81, %s82
    %p91 = scmp.eq.s32.totalorder %s15, 0
    %p92 = por %p90, %p91
    %p93 = scmp.ne.s32.totalorder %s81, %s82
    %p94 = scmp.eq.s32.totalorder %s16, 1
    %p95 = por %p93, %p94
    %p97 = scmp.ne.s32.totalorder %s82, %s96
    %p98 = scmp.eq.s32.totalorder %s16, 0
    %p99 = por %p97, %p98
    %s101 = sadd.s32 %s100, 1
    %p104 = scmp.eq.s32.totalorder %s10, 1
    %p105 = scmp.ne.s32.totalorder %s100, %s102
    %p106 = scmp.eq.s32.totalorder %s10, 0
    %p107 = por %p105, %p106
    %p108 = scmp.ne.s32.totalorder %s100, %s102
    %p109 = scmp.eq.s32.totalorder %s15, 1
    %p110 = por %p108, %p109
    %p111 = scmp.ne.s32.totalorder %s102, %s103
    %p112 = scmp.eq.s32.totalorder %s15, 0
    %p113 = por %p111, %p112
    %p114 = scmp.ne.s32.totalorder %s102, %s103
    %p115 = scmp.eq.s32.totalorder %s16, 1
    %p116 = por %p114, %p115
    %p118 = scmp.ne.s32.totalorder %s103, %s117
    %p119 = scmp.eq.s32.totalorder %s16, 0
    %p120 = por %p118, %p119
    %s121 = ssub.s32 %s17, %s29
    %s122 = ssub.s32 %s18, %s25
    %s123 = sor.u32 %s121, %s122
    %p124 = scmp.eq.s32.totalorder %s123, 0
    %s126 = sadd.s32 %s125, 1
    %s127 = scalar_select %p124, %s125, %s126
    %p130 = pneg %p124
    %p131 = scmp.eq.s32.totalorder %s10, 1
    %p132 = por %p130, %p131
    %p133 = scmp.ne.s32.totalorder %s125, %s128
    %p134 = scmp.eq.s32.totalorder %s10, 0
    %p135 = por %p133, %p134
    %p136 = scmp.ne.s32.totalorder %s125, %s128
    %p137 = scmp.eq.s32.totalorder %s15, 1
    %p138 = por %p136, %p137
    %p139 = scmp.ne.s32.totalorder %s128, %s129
    %p140 = scmp.eq.s32.totalorder %s15, 0
    %p141 = por %p139, %p140
    %p142 = scmp.ne.s32.totalorder %s128, %s129
    %p143 = scmp.eq.s32.totalorder %s16, 1
    %p144 = por %p142, %p143
    %p146 = scmp.ne.s32.totalorder %s129, %s145
    %p147 = scmp.eq.s32.totalorder %s16, 0
    %p148 = por %p146, %p147
    %p149 = scmp.le.s32.totalorder 1, %s10
    %p150 = scmp.lt.s32.totalorder %s10, 3
    %p151 = pnand %p149, %p150
    %p152 = pneg %p151
    // Predicated region
    $region9: #{stem_block3d_pallas.3} parent=5 // pred_check
      _
    $region10: #{stem_block3d_pallas.3} parent=5 // pred_check_branch
      %154 = sbr.rel (%p151) target = $region12
    $region11: #{stem_block3d_pallas.3} parent=5 // pred_region
      %s155 = ssub.s32 %s10, 1
      // Predicated region
      $region13: #{stem_block3d_pallas.3} parent=11 // pred_check
        %p156 = pneg %p71
      $region14: #{stem_block3d_pallas.3} parent=11 // pred_check_branch
        %158 = sbr.rel (%p156) target = $region16
      $region15: #{stem_block3d_pallas.3} parent=11 // pred_region
        _
      $region16: #{stem_block3d_pallas.3} parent=11 // pred_fallthru
        _
      // Predicated region
      $region17: #{stem_block3d_pallas.3} parent=11 // pred_check
        %p159 = pneg %p92
      $region18: #{stem_block3d_pallas.3} parent=11 // pred_check_branch
        %161 = sbr.rel (%p159) target = $region20
      $region19: #{stem_block3d_pallas.3} parent=11 // pred_region
        _
      $region20: #{stem_block3d_pallas.3} parent=11 // pred_fallthru
        _
      // Predicated region
      $region21: #{stem_block3d_pallas.3} parent=11 // pred_check
        %p162 = pneg %p113
      $region22: #{stem_block3d_pallas.3} parent=11 // pred_check_branch
        %164 = sbr.rel (%p162) target = $region24
      $region23: #{stem_block3d_pallas.3} parent=11 // pred_region
        _
      $region24: #{stem_block3d_pallas.3} parent=11 // pred_fallthru
        _
    $region12: #{stem_block3d_pallas.3} parent=5 // pred_fallthru
      _
    %p165 = scmp.lt.s32.totalorder %s10, 2
    // Predicated region
    $region25: #{stem_block3d_pallas.3} parent=5 // pred_check
      %p166 = pneg %p165
    $region26: #{stem_block3d_pallas.3} parent=5 // pred_check_branch
      %168 = sbr.rel (%p166) target = $region28
    $region27: #{stem_block3d_pallas.3} parent=5 // pred_region
      // Predicated region
      $region29: #{stem_block3d_pallas.3} parent=27 // pred_check
        %p169 = pneg %p44
      $region30: #{stem_block3d_pallas.3} parent=27 // pred_check_branch
        %171 = sbr.rel (%p169) target = $region32
      $region31: #{stem_block3d_pallas.3} parent=27 // pred_region
        %p172 = scmp.lt.s32.totalorder %s17, 1
        %s173 = scalar_select %p172, %s17, 1
        %p174 = scmp.lt.s32.totalorder %s18, 0
        %s175 = scalar_select %p174, %s18, 0
        %s176 = smul.addr %s173, 27
        %s177 = sadd.s32 %s175, %s176
        %s178 = smul.addr %s177, 4
        %s179 = scalar_lea.vmem %s0, %s178
      $region32: #{stem_block3d_pallas.3} parent=27 // pred_fallthru
        _
    $region28: #{stem_block3d_pallas.3} parent=5 // pred_fallthru
      _
    %p180 = scmp.le.s32.totalorder 1, %s10
    %p181 = scmp.lt.s32.totalorder %s10, 3
    %p182 = pnand %p180, %p181
    %p183 = pneg %p182
    // Predicated region
    $region33: #{stem_block3d_pallas.3} parent=5 // pred_check
      _
    $region34: #{stem_block3d_pallas.3} parent=5 // pred_check_branch
      %185 = sbr.rel (%p182) target = $region36
    $region35: #{stem_block3d_pallas.3} parent=5 // pred_region
      %s186 = ssub.s32 %s10, 1
      %p187 = scmp.lt.s32.totalorder %s19, 1
      %s188 = scalar_select %p187, %s19, 1
      %p189 = scmp.lt.s32.totalorder %s20, 0
      %s190 = scalar_select %p189, %s20, 0
      %s191 = smul.addr %s188, 27
      %s192 = sadd.s32 %s190, %s191
      %s193 = smul.addr %s192, 4
      %s194 = scalar_lea.vmem %s0, %s193
      %p195 = pneg %p50
      %p196 = pneg %p47
      %p197 = pneg %p71
      %p198 = pneg %p68
      %p199 = pneg %p92
      %p200 = pneg %p89
      %p201 = pneg %p113
      %p202 = pneg %p110
      %p203 = pneg %p141
      %p204 = pneg %p138
      %p205 = scmp.lt.s32.totalorder %s19, 1
      %s206 = scalar_select %p205, %s19, 1
      %p207 = scmp.lt.s32.totalorder %s20, 0
      %s208 = scalar_select %p207, %s20, 0
      %s209 = smul.addr %s206, 2
      %s210 = sadd.s32 %s208, %s209
      %s211 = smul.addr %s210, 4
      %s212 = scalar_lea.vmem %s4, %s211
      %p213 = scmp.lt.s32.totalorder %s19, 1
      %s214 = scalar_select %p213, %s19, 1
      %p215 = scmp.lt.s32.totalorder %s20, 0
      %s216 = scalar_select %p215, %s20, 0
      %s217 = smul.addr %s214, 27
      %s218 = sadd.s32 %s216, %s217
      %s219 = smul.addr %s218, 4
      %s220 = scalar_lea.vmem %s0, %s219
      %p221 = scmp.lt.s32.totalorder %s19, 1
      %s222 = scalar_select %p221, %s19, 1
      %p223 = scmp.lt.s32.totalorder %s20, 0
      %s224 = scalar_select %p223, %s20, 0
      %s225 = smul.addr %s222, 2
      %s226 = sadd.s32 %s224, %s225
      %s227 = smul.addr %s226, 4
      %s228 = scalar_lea.vmem %s4, %s227
      %v230 = vld [vmem:[%s1] sm:$0xff]
      %v231 = vld [vmem:[%s1 + $0x8] sm:$0xff]
      %v232 = vld [vmem:[%s220] sm:$0xf]
      %v233 = vld [vmem:[%s220 + $0x4] sm:$0xf]
      %v234 = vld [vmem:[%s220 + $0x8] sm:$0xf]
      %v235 = vld [vmem:[%s220 + $0xc] sm:$0xf]
      %v236 = vld [vmem:[%s220 + $0x10] sm:$0xf]
      %v237 = vld [vmem:[%s220 + $0x14] sm:$0xf]
      %v238 = vld [vmem:[%s220 + $0x18] sm:$0xf]
      %v239 = vld [vmem:[%s220 + $0x1c] sm:$0xf]
      %v240 = vld [vmem:[%s220 + $0x20] sm:$0xf]
      %v241 = vld [vmem:[%s220 + $0x24] sm:$0xf]
      %v242 = vld [vmem:[%s220 + $0x28] sm:$0xf]
      %v243 = vld [vmem:[%s220 + $0x2c] sm:$0xf]
      %v244 = vld [vmem:[%s220 + $0x30] sm:$0xf]
      %v245 = vld [vmem:[%s220 + $0x34] sm:$0xf]
      %v246 = vld [vmem:[%s220 + $0x38] sm:$0xf]
      %v247 = vld [vmem:[%s220 + $0x3c] sm:$0xf]
      %v248 = vld [vmem:[%s220 + $0x40] sm:$0xf]
      %v249 = vld [vmem:[%s220 + $0x44] sm:$0xf]
      %v250 = vld [vmem:[%s220 + $0x48] sm:$0xf]
      %v251 = vld [vmem:[%s220 + $0x4c] sm:$0xf]
      %v252 = vld [vmem:[%s220 + $0x50] sm:$0xf]
      %v253 = vld [vmem:[%s220 + $0x54] sm:$0xf]
      %v254 = vld [vmem:[%s220 + $0x58] sm:$0xf]
      %v255 = vld [vmem:[%s220 + $0x5c] sm:$0xf]
      %v256 = vld [vmem:[%s220 + $0x60] sm:$0xf]
      %v257 = vld [vmem:[%s220 + $0x64] sm:$0xf]
      %v258 = vld [vmem:[%s220 + $0x68] sm:$0xf]
      %v261 = vunpack.c.l.b16 %v230
      %v262 = vunpack.c.h.b16 %v230
      %v263 = vunpack.c.l.b16 %v231
      %v264 = vunpack.c.h.b16 %v231
      %v265 = vpack.c.b16 %v263, %v261
      %v266 = vpack.c.b16 %v264, %v262
      %v295 = vunpack.c.l.b16 %v232
      %v296 = vunpack.c.l.b16 %v233
      %v297 = vunpack.c.l.b16 %v234
      %v298 = vunpack.c.l.b16 %v235
      %v299 = vunpack.c.l.b16 %v236
      %v300 = vunpack.c.l.b16 %v237
      %v301 = vunpack.c.l.b16 %v238
      %v302 = vunpack.c.l.b16 %v239
      %v303 = vunpack.c.l.b16 %v240
      %v304 = vunpack.c.l.b16 %v241
      %v305 = vunpack.c.l.b16 %v242
      %v306 = vunpack.c.l.b16 %v243
      %v307 = vunpack.c.l.b16 %v244
      %v308 = vunpack.c.l.b16 %v245
      %v309 = vunpack.c.l.b16 %v246
      %v310 = vunpack.c.l.b16 %v247
      %v311 = vunpack.c.l.b16 %v248
      %v312 = vunpack.c.l.b16 %v249
      %v313 = vunpack.c.l.b16 %v250
      %v314 = vunpack.c.l.b16 %v251
      %v315 = vunpack.c.l.b16 %v252
      %v316 = vunpack.c.l.b16 %v253
      %v317 = vunpack.c.l.b16 %v254
      %v318 = vunpack.c.l.b16 %v255
      %v319 = vunpack.c.l.b16 %v256
      %v320 = vunpack.c.l.b16 %v257
      %v321 = vunpack.c.l.b16 %v258
      %v322 = vpack.c.b16 %v296, %v295
      %v323 = vpack.c.b16 %v298, %v297
      %v324 = vpack.c.b16 %v300, %v299
      %v325 = vpack.c.b16 %v302, %v301
      %v326 = vpack.c.b16 %v304, %v303
      %v327 = vpack.c.b16 %v306, %v305
      %v328 = vpack.c.b16 %v308, %v307
      %v329 = vpack.c.b16 %v310, %v309
      %v330 = vpack.c.b16 %v312, %v311
      %v331 = vpack.c.b16 %v314, %v313
      %v332 = vpack.c.b16 %v316, %v315
      %v333 = vpack.c.b16 %v318, %v317
      %v334 = vpack.c.b16 %v320, %v319
      %v335 = vpack.c.b16 %v321, %v321
      %vm349 = vcmask 719872
      %v351 = vsel %vm349, %v266, 0
      %vm353 = vcmask 1043456
      %v355 = vsel %vm353, %v335, 0
      %357 = vmatpush.bf16.msra.mxu0 %v329
      %358 = vmatpush.bf16.msra.mxu0 %v328
      %359 = vmatpush.bf16.msra.mxu0 %v327
      %360 = vmatpush.bf16.msra.mxu0 %v326
      %361 = vmatpush.bf16.msra.mxu0 %v325
      %362 = vmatpush.bf16.msra.mxu0 %v324
      %363 = vmatpush.bf16.msra.mxu0 %v323
      %364 = vmatpush.bf16.msra.mxu0 %v322
      %365 = vmatmul.bf16.gmra.mxu0 %v265
      %v366 = vpop.f32.mrf.mxu0
      %v367 = vadd.f32 0.0, %v366
      %v368 = vpop.f32.mrf.mxu0
      %v369 = vadd.f32 0.0, %v368
      %370 = vdwg.mxu0
      %371 = vmatpush.bf16.msra.mxu0 0
      %372 = vmatpush.bf16.msra.mxu0 0
      %373 = vmatpush.bf16.msra.mxu0 %v355
      %374 = vmatpush.bf16.msra.mxu0 %v334
      %375 = vmatpush.bf16.msra.mxu0 %v333
      %376 = vmatpush.bf16.msra.mxu0 %v332
      %377 = vmatpush.bf16.msra.mxu0 %v331
      %378 = vmatpush.bf16.msra.mxu0 %v330
      %379 = vmatmul.bf16.gmra.mxu0 %v351
      %v380 = vpop.f32.mrf.mxu0
      %v381 = vadd.f32 %v367, %v380
      %v382 = vpop.f32.mrf.mxu0
      %v383 = vadd.f32 %v369, %v382
      %384 = vdwg.mxu0
      %v385 = vld [vmem:[%s2] sm:$0xff]
      %v386 = vld [vmem:[%s2 + $0x8] sm:$0xff]
      %388 = vset.pattern.permute.xlu0 0
      %389 = vperm.xlu0 %388, %v385
      %v390 = vpop.permute.xlu0 %389
      %393 = vset.pattern.permute.xlu0 0
      %394 = vperm.xlu0 %393, %v386
      %v395 = vpop.permute.xlu0 %394
      %v397 = vmul.f32 %v381, %v390
      %v398 = vmul.f32 %v383, %v395
      %v399 = vld [vmem:[%s3] sm:$0xff]
      %v400 = vld [vmem:[%s3 + $0x8] sm:$0xff]
      %402 = vset.pattern.permute.xlu0 0
      %403 = vperm.xlu0 %402, %v399
      %v404 = vpop.permute.xlu0 %403
      %407 = vset.pattern.permute.xlu0 0
      %408 = vperm.xlu0 %407, %v400
      %v409 = vpop.permute.xlu0 %408
      %v411 = vadd.f32 %v397, %v404
      %v412 = vadd.f32 %v398, %v409
      %v413 = vmax.f32 %v411, 0.0
      %v414 = vmax.f32 %v412, 0.0
      %v415 = vpack.c.bf16 %v413, %v413
      %v416 = vpack.c.bf16 %v414, %v414
      %vm417 = vcmask 519168
      %418 = vst.msk [vmem:[%s228] sm:$0xf] %vm417, %v415
      %419 = vst.msk [vmem:[%s228 + $0x4] sm:$0xf] %vm417, %v416
      %p420 = scmp.lt.s32.totalorder %s19, 1
      %s421 = scalar_select %p420, %s19, 1
      %p422 = scmp.lt.s32.totalorder %s20, 0
      %s423 = scalar_select %p422, %s20, 0
      %s424 = smul.addr %s421, 2
      %s425 = sadd.s32 %s423, %s424
      %s426 = smul.addr %s425, 4
      %s427 = scalar_lea.vmem %s4, %s426
      // Predicated region
      $region37: #{stem_block3d_pallas.3} parent=35 // pred_check
        %p428 = pneg %p138
      $region38: #{stem_block3d_pallas.3} parent=35 // pred_check_branch
        %430 = sbr.rel (%p428) target = $region40
      $region39: #{stem_block3d_pallas.3} parent=35 // pred_region
        _
      $region40: #{stem_block3d_pallas.3} parent=35 // pred_fallthru
        _
    $region36: #{stem_block3d_pallas.3} parent=5 // pred_fallthru
      _
    %p431 = scmp.le.s32.totalorder 2, %s10
    // Predicated region
    $region41: #{stem_block3d_pallas.3} parent=5 // pred_check
      %p432 = pneg %p431
    $region42: #{stem_block3d_pallas.3} parent=5 // pred_check_branch
      %434 = sbr.rel (%p432) target = $region44
    $region43: #{stem_block3d_pallas.3} parent=5 // pred_region
      %s435 = ssub.s32 %s10, 2
      // Predicated region
      $region45: #{stem_block3d_pallas.3} parent=43 // pred_check
        %p436 = pneg %p144
      $region46: #{stem_block3d_pallas.3} parent=43 // pred_check_branch
        %438 = sbr.rel (%p436) target = $region48
      $region47: #{stem_block3d_pallas.3} parent=43 // pred_region
        %p439 = scmp.lt.s32.totalorder %s21, 1
        %s440 = scalar_select %p439, %s21, 1
        %p441 = scmp.lt.s32.totalorder %s22, 0
        %s442 = scalar_select %p441, %s22, 0
        %s443 = smul.addr %s440, 2
        %s444 = sadd.s32 %s442, %s443
        %s445 = smul.addr %s444, 4
        %s446 = scalar_lea.vmem %s4, %s445
      $region48: #{stem_block3d_pallas.3} parent=43 // pred_fallthru
        _
    $region44: #{stem_block3d_pallas.3} parent=5 // pred_fallthru
      _
  $region6: #{stem_block3d_pallas.3} parent=0 // loop_footer
    %s14 = sadd.s32 1, %s10
  $region7: #{stem_block3d_pallas.3} parent=0 // loop_footer_branch
    %9 = sbr.rel target = $region3
  $region8: #{stem_block3d_pallas.3} parent=0 // loop_exit
    _

// kernel: stem_block3d_pallas.4
$region0: #{stem_block3d_pallas.4}
  #allocation0 [shape = 'u32[]', space=smem, size = 0x4, offset = 0x4, fixed_abs, tag = 'smem constant byte address 0x4 - core index']
  #allocation1 [shape = 'u32[72,128]{1,0:T(1,128)}', space=vmem, size = 0x9000, scoped, tag = 'internal scratch']
  %s0 = inlined_call_operand.vmem [shape: bf16[2,432,64], index: 0, kind: input, shape index: {}]
  %s1 = inlined_call_operand.vmem [shape: bf16[2,8,64], index: 1, kind: input, shape index: {}]
  %s2 = inlined_call_operand.vmem [shape: bf16[16,432], index: 2, kind: input, shape index: {}]
  %s3 = inlined_call_operand.vmem [shape: bf16[16,8], index: 3, kind: input, shape index: {}]
  %s4 = inlined_call_operand.vmem [shape: f32[16,1], index: 4, kind: input, shape index: {}]
  %s5 = inlined_call_operand.vmem [shape: f32[16,1], index: 5, kind: input, shape index: {}]
  %s6 = inlined_call_operand.vmem [shape: f32[2,16,64], index: 6, kind: output, shape index: {0}]
  %s7 = inlined_call_operand.vmem [shape: f32[2,1,16,1], index: 7, kind: output, shape index: {1}]
  %8 = xla_tuple %s6, %s7
  %s9 = sld [smem:[#allocation0]]
  $region69: #{stem_block3d_pallas.4} parent=0
    _
  %s11 = ssub.s32 1, %s9
  %s12 = scalar_select 0, %s11, %s9
  loop: start=0, step=1, limit=4
  $region2: #{stem_block3d_pallas.4} parent=0 // loop_pre_header
    _
  $region3: #{stem_block3d_pallas.4} parent=0 // loop_header
    %s14 = sphi 0, %s18
    %p15 = scmp.ge.s32.totalorder %s14, 4
    %s21 = sphi 0, %s40
    %s22 = sphi 0, %s36
    %s23 = sphi 0, %s32
    %s24 = sphi 0, %s21
    %s25 = sphi 0, %s22
    %s26 = sphi 0, %s23
    %s27 = sphi 0, %s24
    %s28 = sphi 0, %s25
    %s29 = sphi 0, %s26
    %s47 = sphi 0, %s49
    %s50 = sphi 0, %s47
    %s51 = sphi 0, %s50
    %s67 = sphi 0, %s51
    %s77 = sphi 0, %s79
    %s80 = sphi 0, %s77
    %s81 = sphi 0, %s80
    %s97 = sphi 0, %s81
    %s101 = sphi 0, %s101
    %s103 = sphi 0, %s101
    %s104 = sphi 0, %s103
    %s118 = sphi 0, %s104
    %s122 = sphi 0, %s122
    %s124 = sphi 0, %s122
    %s125 = sphi 0, %s124
    %s139 = sphi 0, %s125
    %s143 = sphi 0, %s143
    %s145 = sphi 0, %s143
    %s146 = sphi 0, %s145
    %s160 = sphi 0, %s146
    %s164 = sphi 0, %s164
    %s166 = sphi 0, %s164
    %s167 = sphi 0, %s166
    %s181 = sphi 0, %s167
    %s191 = sphi 0, %s193
    %s194 = sphi 0, %s191
    %s195 = sphi 0, %s194
    %s211 = sphi 0, %s195
    %s219 = sphi 0, %s221
    %s222 = sphi 0, %s219
    %s223 = sphi 0, %s222
    %s239 = sphi 0, %s223
  $region4: #{stem_block3d_pallas.4} parent=0 // loop_header_branch
    %17 = sbr.rel (%p15) target = $region8
  $region5: #{stem_block3d_pallas.4} parent=0 // loop_body
    %s19 = ssub.s32 %s14, 1
    %s20 = ssub.s32 %s14, 2
    %s30 = sadd.s32 1, %s23
    %p31 = scmp.ge.s32.totalorder %s30, 1
    %s32 = scalar_select %p31, 0, %s30
    %s33 = sadd.s32 1, %s22
    %s34 = scalar_select %p31, %s33, %s22
    %p35 = scmp.ge.s32.totalorder %s34, 1
    %s36 = scalar_select %p35, 0, %s34
    %s37 = sadd.s32 1, %s21
    %s38 = scalar_select %p35, %s37, %s21
    %p39 = scmp.ge.s32.totalorder %s38, 2
    %s40 = scalar_select %p39, 0, %s38
    %s41 = sadd.s32 %s22, %s23
    %s42 = sadd.s32 %s36, %s32
    %s43 = ssub.s32 %s21, %s40
    %s44 = ssub.s32 %s41, %s42
    %s45 = sor.u32 %s43, %s44
    %p46 = scmp.eq.s32.totalorder %s45, 0
    %s48 = sadd.s32 %s47, 1
    %s49 = scalar_select %p46, %s47, %s48
    %p52 = pneg %p46
    %p53 = scmp.eq.s32.totalorder %s14, 1
    %p54 = por %p52, %p53
    %p55 = scmp.ne.s32.totalorder %s47, %s50
    %p56 = scmp.eq.s32.totalorder %s14, 0
    %p57 = por %p55, %p56
    %p58 = scmp.ne.s32.totalorder %s47, %s50
    %p59 = scmp.eq.s32.totalorder %s19, 1
    %p60 = por %p58, %p59
    %p61 = scmp.ne.s32.totalorder %s50, %s51
    %p62 = scmp.eq.s32.totalorder %s19, 0
    %p63 = por %p61, %p62
    %p64 = scmp.ne.s32.totalorder %s50, %s51
    %p65 = scmp.eq.s32.totalorder %s20, 1
    %p66 = por %p64, %p65
    %p68 = scmp.ne.s32.totalorder %s51, %s67
    %p69 = scmp.eq.s32.totalorder %s20, 0
    %p70 = por %p68, %p69
    %s71 = sadd.s32 %s22, %s23
    %s72 = sadd.s32 %s36, %s32
    %s73 = ssub.s32 %s21, %s40
    %s74 = ssub.s32 %s71, %s72
    %s75 = sor.u32 %s73, %s74
    %p76 = scmp.eq.s32.totalorder %s75, 0
    %s78 = sadd.s32 %s77, 1
    %s79 = scalar_select %p76, %s77, %s78
    %p82 = pneg %p76
    %p83 = scmp.eq.s32.totalorder %s14, 1
    %p84 = por %p82, %p83
    %p85 = scmp.ne.s32.totalorder %s77, %s80
    %p86 = scmp.eq.s32.totalorder %s14, 0
    %p87 = por %p85, %p86
    %p88 = scmp.ne.s32.totalorder %s77, %s80
    %p89 = scmp.eq.s32.totalorder %s19, 1
    %p90 = por %p88, %p89
    %p91 = scmp.ne.s32.totalorder %s80, %s81
    %p92 = scmp.eq.s32.totalorder %s19, 0
    %p93 = por %p91, %p92
    %p94 = scmp.ne.s32.totalorder %s80, %s81
    %p95 = scmp.eq.s32.totalorder %s20, 1
    %p96 = por %p94, %p95
    %p98 = scmp.ne.s32.totalorder %s81, %s97
    %p99 = scmp.eq.s32.totalorder %s20, 0
    %p100 = por %p98, %p99
    %s102 = sadd.s32 %s101, 1
    %p105 = scmp.eq.s32.totalorder %s14, 1
    %p106 = scmp.ne.s32.totalorder %s101, %s103
    %p107 = scmp.eq.s32.totalorder %s14, 0
    %p108 = por %p106, %p107
    %p109 = scmp.ne.s32.totalorder %s101, %s103
    %p110 = scmp.eq.s32.totalorder %s19, 1
    %p111 = por %p109, %p110
    %p112 = scmp.ne.s32.totalorder %s103, %s104
    %p113 = scmp.eq.s32.totalorder %s19, 0
    %p114 = por %p112, %p113
    %p115 = scmp.ne.s32.totalorder %s103, %s104
    %p116 = scmp.eq.s32.totalorder %s20, 1
    %p117 = por %p115, %p116
    %p119 = scmp.ne.s32.totalorder %s104, %s118
    %p120 = scmp.eq.s32.totalorder %s20, 0
    %p121 = por %p119, %p120
    %s123 = sadd.s32 %s122, 1
    %p126 = scmp.eq.s32.totalorder %s14, 1
    %p127 = scmp.ne.s32.totalorder %s122, %s124
    %p128 = scmp.eq.s32.totalorder %s14, 0
    %p129 = por %p127, %p128
    %p130 = scmp.ne.s32.totalorder %s122, %s124
    %p131 = scmp.eq.s32.totalorder %s19, 1
    %p132 = por %p130, %p131
    %p133 = scmp.ne.s32.totalorder %s124, %s125
    %p134 = scmp.eq.s32.totalorder %s19, 0
    %p135 = por %p133, %p134
    %p136 = scmp.ne.s32.totalorder %s124, %s125
    %p137 = scmp.eq.s32.totalorder %s20, 1
    %p138 = por %p136, %p137
    %p140 = scmp.ne.s32.totalorder %s125, %s139
    %p141 = scmp.eq.s32.totalorder %s20, 0
    %p142 = por %p140, %p141
    %s144 = sadd.s32 %s143, 1
    %p147 = scmp.eq.s32.totalorder %s14, 1
    %p148 = scmp.ne.s32.totalorder %s143, %s145
    %p149 = scmp.eq.s32.totalorder %s14, 0
    %p150 = por %p148, %p149
    %p151 = scmp.ne.s32.totalorder %s143, %s145
    %p152 = scmp.eq.s32.totalorder %s19, 1
    %p153 = por %p151, %p152
    %p154 = scmp.ne.s32.totalorder %s145, %s146
    %p155 = scmp.eq.s32.totalorder %s19, 0
    %p156 = por %p154, %p155
    %p157 = scmp.ne.s32.totalorder %s145, %s146
    %p158 = scmp.eq.s32.totalorder %s20, 1
    %p159 = por %p157, %p158
    %p161 = scmp.ne.s32.totalorder %s146, %s160
    %p162 = scmp.eq.s32.totalorder %s20, 0
    %p163 = por %p161, %p162
    %s165 = sadd.s32 %s164, 1
    %p168 = scmp.eq.s32.totalorder %s14, 1
    %p169 = scmp.ne.s32.totalorder %s164, %s166
    %p170 = scmp.eq.s32.totalorder %s14, 0
    %p171 = por %p169, %p170
    %p172 = scmp.ne.s32.totalorder %s164, %s166
    %p173 = scmp.eq.s32.totalorder %s19, 1
    %p174 = por %p172, %p173
    %p175 = scmp.ne.s32.totalorder %s166, %s167
    %p176 = scmp.eq.s32.totalorder %s19, 0
    %p177 = por %p175, %p176
    %p178 = scmp.ne.s32.totalorder %s166, %s167
    %p179 = scmp.eq.s32.totalorder %s20, 1
    %p180 = por %p178, %p179
    %p182 = scmp.ne.s32.totalorder %s167, %s181
    %p183 = scmp.eq.s32.totalorder %s20, 0
    %p184 = por %p182, %p183
    %s185 = sadd.s32 %s22, %s23
    %s186 = sadd.s32 %s36, %s32
    %s187 = ssub.s32 %s21, %s40
    %s188 = ssub.s32 %s185, %s186
    %s189 = sor.u32 %s187, %s188
    %p190 = scmp.eq.s32.totalorder %s189, 0
    %s192 = sadd.s32 %s191, 1
    %s193 = scalar_select %p190, %s191, %s192
    %p196 = pneg %p190
    %p197 = scmp.eq.s32.totalorder %s14, 1
    %p198 = por %p196, %p197
    %p199 = scmp.ne.s32.totalorder %s191, %s194
    %p200 = scmp.eq.s32.totalorder %s14, 0
    %p201 = por %p199, %p200
    %p202 = scmp.ne.s32.totalorder %s191, %s194
    %p203 = scmp.eq.s32.totalorder %s19, 1
    %p204 = por %p202, %p203
    %p205 = scmp.ne.s32.totalorder %s194, %s195
    %p206 = scmp.eq.s32.totalorder %s19, 0
    %p207 = por %p205, %p206
    %p208 = scmp.ne.s32.totalorder %s194, %s195
    %p209 = scmp.eq.s32.totalorder %s20, 1
    %p210 = por %p208, %p209
    %p212 = scmp.ne.s32.totalorder %s195, %s211
    %p213 = scmp.eq.s32.totalorder %s20, 0
    %p214 = por %p212, %p213
    %s215 = ssub.s32 %s21, %s40
    %s216 = ssub.s32 %s22, %s36
    %s217 = sor.u32 %s215, %s216
    %p218 = scmp.eq.s32.totalorder %s217, 0
    %s220 = sadd.s32 %s219, 1
    %s221 = scalar_select %p218, %s219, %s220
    %p224 = pneg %p218
    %p225 = scmp.eq.s32.totalorder %s14, 1
    %p226 = por %p224, %p225
    %p227 = scmp.ne.s32.totalorder %s219, %s222
    %p228 = scmp.eq.s32.totalorder %s14, 0
    %p229 = por %p227, %p228
    %p230 = scmp.ne.s32.totalorder %s219, %s222
    %p231 = scmp.eq.s32.totalorder %s19, 1
    %p232 = por %p230, %p231
    %p233 = scmp.ne.s32.totalorder %s222, %s223
    %p234 = scmp.eq.s32.totalorder %s19, 0
    %p235 = por %p233, %p234
    %p236 = scmp.ne.s32.totalorder %s222, %s223
    %p237 = scmp.eq.s32.totalorder %s20, 1
    %p238 = por %p236, %p237
    %p240 = scmp.ne.s32.totalorder %s223, %s239
    %p241 = scmp.eq.s32.totalorder %s20, 0
    %p242 = por %p240, %p241
    %p243 = scmp.le.s32.totalorder 1, %s14
    %p244 = scmp.lt.s32.totalorder %s14, 3
    %p245 = pnand %p243, %p244
    %p246 = pneg %p245
    // Predicated region
    $region9: #{stem_block3d_pallas.4} parent=5 // pred_check
      _
    $region10: #{stem_block3d_pallas.4} parent=5 // pred_check_branch
      %248 = sbr.rel (%p245) target = $region12
    $region11: #{stem_block3d_pallas.4} parent=5 // pred_region
      %s249 = ssub.s32 %s14, 1
      // Predicated region
      $region13: #{stem_block3d_pallas.4} parent=11 // pred_check
        %p250 = pneg %p114
      $region14: #{stem_block3d_pallas.4} parent=11 // pred_check_branch
        %252 = sbr.rel (%p250) target = $region16
      $region15: #{stem_block3d_pallas.4} parent=11 // pred_region
        _
      $region16: #{stem_block3d_pallas.4} parent=11 // pred_fallthru
        _
      // Predicated region
      $region17: #{stem_block3d_pallas.4} parent=11 // pred_check
        %p253 = pneg %p135
      $region18: #{stem_block3d_pallas.4} parent=11 // pred_check_branch
        %255 = sbr.rel (%p253) target = $region20
      $region19: #{stem_block3d_pallas.4} parent=11 // pred_region
        _
      $region20: #{stem_block3d_pallas.4} parent=11 // pred_fallthru
        _
      // Predicated region
      $region21: #{stem_block3d_pallas.4} parent=11 // pred_check
        %p256 = pneg %p156
      $region22: #{stem_block3d_pallas.4} parent=11 // pred_check_branch
        %258 = sbr.rel (%p256) target = $region24
      $region23: #{stem_block3d_pallas.4} parent=11 // pred_region
        _
      $region24: #{stem_block3d_pallas.4} parent=11 // pred_fallthru
        _
      // Predicated region
      $region25: #{stem_block3d_pallas.4} parent=11 // pred_check
        %p259 = pneg %p177
      $region26: #{stem_block3d_pallas.4} parent=11 // pred_check_branch
        %261 = sbr.rel (%p259) target = $region28
      $region27: #{stem_block3d_pallas.4} parent=11 // pred_region
        _
      $region28: #{stem_block3d_pallas.4} parent=11 // pred_fallthru
        _
    $region12: #{stem_block3d_pallas.4} parent=5 // pred_fallthru
      _
    %p262 = scmp.lt.s32.totalorder %s14, 2
    // Predicated region
    $region29: #{stem_block3d_pallas.4} parent=5 // pred_check
      %p263 = pneg %p262
    $region30: #{stem_block3d_pallas.4} parent=5 // pred_check_branch
      %265 = sbr.rel (%p263) target = $region32
    $region31: #{stem_block3d_pallas.4} parent=5 // pred_region
      // Predicated region
      $region33: #{stem_block3d_pallas.4} parent=31 // pred_check
        %p266 = pneg %p57
      $region34: #{stem_block3d_pallas.4} parent=31 // pred_check_branch
        %268 = sbr.rel (%p266) target = $region36
      $region35: #{stem_block3d_pallas.4} parent=31 // pred_region
        %s269 = sadd.s32 %s22, %s23
        %p270 = scmp.lt.s32.totalorder %s21, 1
        %s271 = scalar_select %p270, %s21, 1
        %p272 = scmp.lt.s32.totalorder %s269, 0
        %s273 = scalar_select %p272, %s269, 0
        %s274 = smul.addr %s271, 54
        %s275 = sadd.s32 %s273, %s274
        %s276 = smul.addr %s275, 4
        %s277 = scalar_lea.vmem %s0, %s276
        %s278 = sadd.s32 %s22, %s23
      $region36: #{stem_block3d_pallas.4} parent=31 // pred_fallthru
        _
      // Predicated region
      $region37: #{stem_block3d_pallas.4} parent=31 // pred_check
        %p279 = pneg %p87
      $region38: #{stem_block3d_pallas.4} parent=31 // pred_check_branch
        %281 = sbr.rel (%p279) target = $region40
      $region39: #{stem_block3d_pallas.4} parent=31 // pred_region
        %s282 = sadd.s32 %s22, %s23
        %p283 = scmp.lt.s32.totalorder %s21, 1
        %s284 = scalar_select %p283, %s21, 1
        %p285 = scmp.lt.s32.totalorder %s282, 0
        %s286 = scalar_select %p285, %s282, 0
        %s287 = sadd.s32 %s286, %s284
        %s288 = smul.addr %s287, 4
        %s289 = scalar_lea.vmem %s1, %s288
        %s290 = sadd.s32 %s22, %s23
      $region40: #{stem_block3d_pallas.4} parent=31 // pred_fallthru
        _
    $region32: #{stem_block3d_pallas.4} parent=5 // pred_fallthru
      _
    %p291 = scmp.le.s32.totalorder 1, %s14
    %p292 = scmp.lt.s32.totalorder %s14, 3
    %p293 = pnand %p291, %p292
    %p294 = pneg %p293
    // Predicated region
    $region41: #{stem_block3d_pallas.4} parent=5 // pred_check
      _
    $region42: #{stem_block3d_pallas.4} parent=5 // pred_check_branch
      %296 = sbr.rel (%p293) target = $region44
    $region43: #{stem_block3d_pallas.4} parent=5 // pred_region
      %s297 = ssub.s32 %s14, 1
      %s298 = sadd.s32 %s25, %s26
      %p299 = scmp.lt.s32.totalorder %s24, 1
      %s300 = scalar_select %p299, %s24, 1
      %p301 = scmp.lt.s32.totalorder %s298, 0
      %s302 = scalar_select %p301, %s298, 0
      %s303 = smul.addr %s300, 54
      %s304 = sadd.s32 %s302, %s303
      %s305 = smul.addr %s304, 4
      %s306 = scalar_lea.vmem %s0, %s305
      %p307 = pneg %p63
      %p308 = pneg %p60
      %s309 = sadd.s32 %s25, %s26
      %p310 = scmp.lt.s32.totalorder %s24, 1
      %s311 = scalar_select %p310, %s24, 1
      %p312 = scmp.lt.s32.totalorder %s309, 0
      %s313 = scalar_select %p312, %s309, 0
      %s314 = sadd.s32 %s313, %s311
      %s315 = smul.addr %s314, 4
      %s316 = scalar_lea.vmem %s1, %s315
      %p317 = pneg %p93
      %p318 = pneg %p90
      %p319 = pneg %p114
      %p320 = pneg %p111
      %p321 = pneg %p135
      %p322 = pneg %p132
      %p323 = pneg %p156
      %p324 = pneg %p153
      %p325 = pneg %p177
      %p326 = pneg %p174
      %p327 = pneg %p207
      %p328 = pneg %p204
      %s329 = sadd.s32 %s25, %s26
      %p330 = scmp.lt.s32.totalorder %s24, 1
      %s331 = scalar_select %p330, %s24, 1
      %p332 = scmp.lt.s32.totalorder %s329, 0
      %s333 = scalar_select %p332, %s329, 0
      %s334 = smul.addr %s331, 2
      %s335 = sadd.s32 %s333, %s334
      %s336 = smul.addr %s335, 8
      %s337 = scalar_lea.vmem %s6, %s336
      %p338 = pneg %p235
      %p339 = pneg %p232
      %p340 = scmp.lt.s32.totalorder %s24, 1
      %s341 = scalar_select %p340, %s24, 1
      %p342 = scmp.lt.s32.totalorder %s25, 0
      %s343 = scalar_select %p342, %s25, 0
      %s344 = smul.addr %s343, 2
      %s345 = smul.addr %s341, 2
      %s346 = sadd.s32 %s344, %s345
      %s347 = smul.addr %s346, 8
      %s348 = scalar_lea.vmem %s7, %s347
      %s349 = sadd.s32 %s25, %s26
      %p350 = scmp.lt.s32.totalorder %s24, 1
      %s351 = scalar_select %p350, %s24, 1
      %p352 = scmp.lt.s32.totalorder %s349, 0
      %s353 = scalar_select %p352, %s349, 0
      %s354 = smul.addr %s351, 54
      %s355 = sadd.s32 %s353, %s354
      %s356 = smul.addr %s355, 4
      %s357 = scalar_lea.vmem %s0, %s356
      %s358 = sadd.s32 %s25, %s26
      %s359 = sadd.s32 %s25, %s26
      %p360 = scmp.lt.s32.totalorder %s24, 1
      %s361 = scalar_select %p360, %s24, 1
      %p362 = scmp.lt.s32.totalorder %s359, 0
      %s363 = scalar_select %p362, %s359, 0
      %s364 = sadd.s32 %s363, %s361
      %s365 = smul.addr %s364, 4
      %s366 = scalar_lea.vmem %s1, %s365
      %s367 = sadd.s32 %s25, %s26
      %s368 = sadd.s32 %s25, %s26
      %p369 = scmp.lt.s32.totalorder %s24, 1
      %s370 = scalar_select %p369, %s24, 1
      %p371 = scmp.lt.s32.totalorder %s368, 0
      %s372 = scalar_select %p371, %s368, 0
      %s373 = smul.addr %s370, 2
      %s374 = sadd.s32 %s372, %s373
      %s375 = smul.addr %s374, 8
      %s376 = scalar_lea.vmem %s6, %s375
      %s377 = sadd.s32 %s25, %s26
      %p378 = scmp.lt.s32.totalorder %s24, 1
      %s379 = scalar_select %p378, %s24, 1
      %p380 = scmp.lt.s32.totalorder %s25, 0
      %s381 = scalar_select %p380, %s25, 0
      %s382 = smul.addr %s381, 2
      %s383 = smul.addr %s379, 2
      %s384 = sadd.s32 %s382, %s383
      %s385 = smul.addr %s384, 8
      %s386 = scalar_lea.vmem %s7, %s385
      %v388 = vld [vmem:[%s2] sm:$0xff]
      %v389 = vld [vmem:[%s2 + $0x8] sm:$0xff]
      %v390 = vld [vmem:[%s2 + $0x10] sm:$0xff]
      %v391 = vld [vmem:[%s2 + $0x18] sm:$0xff]
      %v392 = vld [vmem:[%s357] sm:$0xf]
      %v393 = vld [vmem:[%s357 + $0x4] sm:$0xf]
      %v394 = vld [vmem:[%s357 + $0x8] sm:$0xf]
      %v395 = vld [vmem:[%s357 + $0xc] sm:$0xf]
      %v396 = vld [vmem:[%s357 + $0x10] sm:$0xf]
      %v397 = vld [vmem:[%s357 + $0x14] sm:$0xf]
      %v398 = vld [vmem:[%s357 + $0x18] sm:$0xf]
      %v399 = vld [vmem:[%s357 + $0x1c] sm:$0xf]
      %v400 = vld [vmem:[%s357 + $0x20] sm:$0xf]
      %v401 = vld [vmem:[%s357 + $0x24] sm:$0xf]
      %v402 = vld [vmem:[%s357 + $0x28] sm:$0xf]
      %v403 = vld [vmem:[%s357 + $0x2c] sm:$0xf]
      %v404 = vld [vmem:[%s357 + $0x30] sm:$0xf]
      %v405 = vld [vmem:[%s357 + $0x34] sm:$0xf]
      %v406 = vld [vmem:[%s357 + $0x38] sm:$0xf]
      %v407 = vld [vmem:[%s357 + $0x3c] sm:$0xf]
      %v408 = vld [vmem:[%s357 + $0x40] sm:$0xf]
      %v409 = vld [vmem:[%s357 + $0x44] sm:$0xf]
      %v410 = vld [vmem:[%s357 + $0x48] sm:$0xf]
      %v411 = vld [vmem:[%s357 + $0x4c] sm:$0xf]
      %v412 = vld [vmem:[%s357 + $0x50] sm:$0xf]
      %v413 = vld [vmem:[%s357 + $0x54] sm:$0xf]
      %v414 = vld [vmem:[%s357 + $0x58] sm:$0xf]
      %v415 = vld [vmem:[%s357 + $0x5c] sm:$0xf]
      %v416 = vld [vmem:[%s357 + $0x60] sm:$0xf]
      %v417 = vld [vmem:[%s357 + $0x64] sm:$0xf]
      %v418 = vld [vmem:[%s357 + $0x68] sm:$0xf]
      %v419 = vld [vmem:[%s357 + $0x6c] sm:$0xf]
      %v420 = vld [vmem:[%s357 + $0x70] sm:$0xf]
      %v421 = vld [vmem:[%s357 + $0x74] sm:$0xf]
      %v422 = vld [vmem:[%s357 + $0x78] sm:$0xf]
      %v423 = vld [vmem:[%s357 + $0x7c] sm:$0xf]
      %v424 = vld [vmem:[%s357 + $0x80] sm:$0xf]
      %v425 = vld [vmem:[%s357 + $0x84] sm:$0xf]
      %v426 = vld [vmem:[%s357 + $0x88] sm:$0xf]
      %v427 = vld [vmem:[%s357 + $0x8c] sm:$0xf]
      %v428 = vld [vmem:[%s357 + $0x90] sm:$0xf]
      %v429 = vld [vmem:[%s357 + $0x94] sm:$0xf]
      %v430 = vld [vmem:[%s357 + $0x98] sm:$0xf]
      %v431 = vld [vmem:[%s357 + $0x9c] sm:$0xf]
      %v432 = vld [vmem:[%s357 + $0xa0] sm:$0xf]
      %v433 = vld [vmem:[%s357 + $0xa4] sm:$0xf]
      %v434 = vld [vmem:[%s357 + $0xa8] sm:$0xf]
      %v435 = vld [vmem:[%s357 + $0xac] sm:$0xf]
      %v436 = vld [vmem:[%s357 + $0xb0] sm:$0xf]
      %v437 = vld [vmem:[%s357 + $0xb4] sm:$0xf]
      %v438 = vld [vmem:[%s357 + $0xb8] sm:$0xf]
      %v439 = vld [vmem:[%s357 + $0xbc] sm:$0xf]
      %v440 = vld [vmem:[%s357 + $0xc0] sm:$0xf]
      %v441 = vld [vmem:[%s357 + $0xc4] sm:$0xf]
      %v442 = vld [vmem:[%s357 + $0xc8] sm:$0xf]
      %v443 = vld [vmem:[%s357 + $0xcc] sm:$0xf]
      %v444 = vld [vmem:[%s357 + $0xd0] sm:$0xf]
      %v445 = vld [vmem:[%s357 + $0xd4] sm:$0xf]
      %v446 = vld [vmem:[%s3] sm:$0xf]
      %v447 = vld [vmem:[%s3 + $0x4] sm:$0xf]
      %v448 = vld [vmem:[%s366] sm:$0xf]
      %v451 = vunpack.c.l.b16 %v446
      %v452 = vunpack.c.l.b16 %v447
      %v453 = vpack.c.b16 %v452, %v451
      %vm454 = vcmask 64512
      %v456 = vsel %vm454, %v453, 0
      %vm458 = vcmask 1043456
      %v460 = vsel %vm458, %v448, 0
      %462 = vmatpush.bf16.msra.mxu0 0
      %463 = vmatpush.bf16.msra.mxu0 0
      %464 = vmatpush.bf16.msra.mxu0 0
      %465 = vmatpush.bf16.msra.mxu0 0
      %466 = vmatpush.bf16.msra.mxu0 0
      %467 = vmatpush.bf16.msra.mxu0 0
      %468 = vmatpush.bf16.msra.mxu0 0
      %469 = vmatpush.bf16.msra.mxu0 %v460
      %470 = vmatmul.bf16.gmra.mxu0 %v456
      %v471 = vpop.f32.mrf.mxu0
      %v472 = vadd.f32 0.0, %v471
      %v473 = vpop.f32.mrf.mxu0
      %v474 = vadd.f32 0.0, %v473
      %475 = vdwg.mxu0
      %v476 = vld [vmem:[%s4] sm:$0xff]
      %v477 = vld [vmem:[%s4 + $0x8] sm:$0xff]
      %479 = vset.pattern.permute.xlu0 0
      %480 = vperm.xlu0 %479, %v476
      %v481 = vpop.permute.xlu0 %480
      %484 = vset.pattern.permute.xlu0 0
      %485 = vperm.xlu0 %484, %v477
      %v486 = vpop.permute.xlu0 %485
      %v488 = vmul.f32 %v472, %v481
      %v489 = vmul.f32 %v474, %v486
      %v494 = vunpack.c.l.b16 %v388
      %v495 = vunpack.c.h.b16 %v388
      %v496 = vunpack.c.l.b16 %v389
      %v497 = vunpack.c.h.b16 %v389
      %v498 = vunpack.c.l.b16 %v390
      %v499 = vunpack.c.h.b16 %v390
      %v500 = vunpack.c.l.b16 %v391
      %v501 = vunpack.c.h.b16 %v391
      %v502 = vpack.c.b16 %v498, %v494
      %v503 = vpack.c.b16 %v499, %v495
      %v504 = vpack.c.b16 %v500, %v496
      %v505 = vpack.c.b16 %v501, %v497
      %v563 = vunpack.c.l.b16 %v392
      %v564 = vunpack.c.l.b16 %v393
      %v565 = vunpack.c.l.b16 %v394
      %v566 = vunpack.c.l.b16 %v395
      %v567 = vunpack.c.l.b16 %v396
      %v568 = vunpack.c.l.b16 %v397
      %v569 = vunpack.c.l.b16 %v398
      %v570 = vunpack.c.l.b16 %v399
      %v571 = vunpack.c.l.b16 %v400
      %v572 = vunpack.c.l.b16 %v401
      %v573 = vunpack.c.l.b16 %v402
      %v574 = vunpack.c.l.b16 %v403
      %v575 = vunpack.c.l.b16 %v404
      %v576 = vunpack.c.l.b16 %v405
      %v577 = vunpack.c.l.b16 %v406
      %v578 = vunpack.c.l.b16 %v407
      %v579 = vunpack.c.l.b16 %v408
      %v580 = vunpack.c.l.b16 %v409
      %v581 = vunpack.c.l.b16 %v410
      %v582 = vunpack.c.l.b16 %v411
      %v583 = vunpack.c.l.b16 %v412
      %v584 = vunpack.c.l.b16 %v413
      %v585 = vunpack.c.l.b16 %v414
      %v586 = vunpack.c.l.b16 %v415
      %v587 = vunpack.c.l.b16 %v416
      %v588 = vunpack.c.l.b16 %v417
      %v589 = vunpack.c.l.b16 %v418
      %v590 = vunpack.c.l.b16 %v419
      %v591 = vunpack.c.l.b16 %v420
      %v592 = vunpack.c.l.b16 %v421
      %v593 = vunpack.c.l.b16 %v422
      %v594 = vunpack.c.l.b16 %v423
      %v595 = vunpack.c.l.b16 %v424
      %v596 = vunpack.c.l.b16 %v425
      %v597 = vunpack.c.l.b16 %v426
      %v598 = vunpack.c.l.b16 %v427
      %v599 = vunpack.c.l.b16 %v428
      %v600 = vunpack.c.l.b16 %v429
      %v601 = vunpack.c.l.b16 %v430
      %v602 = vunpack.c.l.b16 %v431
      %v603 = vunpack.c.l.b16 %v432
      %v604 = vunpack.c.l.b16 %v433
      %v605 = vunpack.c.l.b16 %v434
      %v606 = vunpack.c.l.b16 %v435
      %v607 = vunpack.c.l.b16 %v436
      %v608 = vunpack.c.l.b16 %v437
      %v609 = vunpack.c.l.b16 %v438
      %v610 = vunpack.c.l.b16 %v439
      %v611 = vunpack.c.l.b16 %v440
      %v612 = vunpack.c.l.b16 %v441
      %v613 = vunpack.c.l.b16 %v442
      %v614 = vunpack.c.l.b16 %v443
      %v615 = vunpack.c.l.b16 %v444
      %v616 = vunpack.c.l.b16 %v445
      %v617 = vpack.c.b16 %v564, %v563
      %v618 = vpack.c.b16 %v566, %v565
      %v619 = vpack.c.b16 %v568, %v567
      %v620 = vpack.c.b16 %v570, %v569
      %v621 = vpack.c.b16 %v572, %v571
      %v622 = vpack.c.b16 %v574, %v573
      %v623 = vpack.c.b16 %v576, %v575
      %v624 = vpack.c.b16 %v578, %v577
      %v625 = vpack.c.b16 %v580, %v579
      %v626 = vpack.c.b16 %v582, %v581
      %v627 = vpack.c.b16 %v584, %v583
      %v628 = vpack.c.b16 %v586, %v585
      %v629 = vpack.c.b16 %v588, %v587
      %v630 = vpack.c.b16 %v590, %v589
      %v631 = vpack.c.b16 %v592, %v591
      %v632 = vpack.c.b16 %v594, %v593
      %v633 = vpack.c.b16 %v596, %v595
      %v634 = vpack.c.b16 %v598, %v597
      %v635 = vpack.c.b16 %v600, %v599
      %v636 = vpack.c.b16 %v602, %v601
      %v637 = vpack.c.b16 %v604, %v603
      %v638 = vpack.c.b16 %v606, %v605
      %v639 = vpack.c.b16 %v608, %v607
      %v640 = vpack.c.b16 %v610, %v609
      %v641 = vpack.c.b16 %v612, %v611
      %v642 = vpack.c.b16 %v614, %v613
      %v643 = vpack.c.b16 %v616, %v615
      %vm671 = vcmask 392192
      %v673 = vsel %vm671, %v505, 0
      %675 = vmatpush.bf16.msra.mxu0 %v624
      %676 = vmatpush.bf16.msra.mxu0 %v623
      %677 = vmatpush.bf16.msra.mxu0 %v622
      %678 = vmatpush.bf16.msra.mxu0 %v621
      %679 = vmatpush.bf16.msra.mxu0 %v620
      %680 = vmatpush.bf16.msra.mxu0 %v619
      %681 = vmatpush.bf16.msra.mxu0 %v618
      %682 = vmatpush.bf16.msra.mxu0 %v617
      %683 = vmatmul.bf16.gmra.mxu0 %v502
      %v684 = vpop.f32.mrf.mxu0
      %v685 = vadd.f32 %v488, %v684
      %v686 = vpop.f32.mrf.mxu0
      %v687 = vadd.f32 %v489, %v686
      %688 = vdwg.mxu0
      %689 = vmatpush.bf16.msra.mxu0 %v632
      %690 = vmatpush.bf16.msra.mxu0 %v631
      %691 = vmatpush.bf16.msra.mxu0 %v630
      %692 = vmatpush.bf16.msra.mxu0 %v629
      %693 = vmatpush.bf16.msra.mxu0 %v628
      %694 = vmatpush.bf16.msra.mxu0 %v627
      %695 = vmatpush.bf16.msra.mxu0 %v626
      %696 = vmatpush.bf16.msra.mxu0 %v625
      %697 = vmatmul.bf16.gmra.mxu0 %v503
      %v698 = vpop.f32.mrf.mxu0
      %v699 = vadd.f32 %v685, %v698
      %v700 = vpop.f32.mrf.mxu0
      %v701 = vadd.f32 %v687, %v700
      %702 = vdwg.mxu0
      %703 = vmatpush.bf16.msra.mxu0 %v640
      %704 = vmatpush.bf16.msra.mxu0 %v639
      %705 = vmatpush.bf16.msra.mxu0 %v638
      %706 = vmatpush.bf16.msra.mxu0 %v637
      %707 = vmatpush.bf16.msra.mxu0 %v636
      %708 = vmatpush.bf16.msra.mxu0 %v635
      %709 = vmatpush.bf16.msra.mxu0 %v634
      %710 = vmatpush.bf16.msra.mxu0 %v633
      %711 = vmatmul.bf16.gmra.mxu0 %v504
      %v712 = vpop.f32.mrf.mxu0
      %v713 = vadd.f32 %v699, %v712
      %v714 = vpop.f32.mrf.mxu0
      %v715 = vadd.f32 %v701, %v714
      %716 = vdwg.mxu0
      %717 = vmatpush.bf16.msra.mxu0 0
      %718 = vmatpush.bf16.msra.mxu0 0
      %719 = vmatpush.bf16.msra.mxu0 0
      %720 = vmatpush.bf16.msra.mxu0 0
      %721 = vmatpush.bf16.msra.mxu0 0
      %722 = vmatpush.bf16.msra.mxu0 %v643
      %723 = vmatpush.bf16.msra.mxu0 %v642
      %724 = vmatpush.bf16.msra.mxu0 %v641
      %725 = vmatmul.bf16.gmra.mxu0 %v673
      %v726 = vpop.f32.mrf.mxu0
      %v727 = vadd.f32 %v713, %v726
      %v728 = vpop.f32.mrf.mxu0
      %v729 = vadd.f32 %v715, %v728
      %730 = vdwg.mxu0
      %v731 = vld [vmem:[%s5] sm:$0xff]
      %v732 = vld [vmem:[%s5 + $0x8] sm:$0xff]
      %734 = vset.pattern.permute.xlu0 0
      %735 = vperm.xlu0 %734, %v731
      %v736 = vpop.permute.xlu0 %735
      %739 = vset.pattern.permute.xlu0 0
      %740 = vperm.xlu0 %739, %v732
      %v741 = vpop.permute.xlu0 %740
      %v743 = vadd.f32 %v727, %v736
      %v744 = vadd.f32 %v729, %v741
      %vm745 = vcmask 523264
      %746 = vst.msk [vmem:[%s376] sm:$0xff] %vm745, %v743
      %747 = vst.msk [vmem:[%s376 + $0x8] sm:$0xff] %vm745, %v744
      %p748 = scmp.eq.s32.totalorder %s26, 0
      // Predicated region
      $region45: #{stem_block3d_pallas.4} parent=43 // pred_check
        %p749 = pneg %p748
      $region46: #{stem_block3d_pallas.4} parent=43 // pred_check_branch
        %751 = sbr.rel (%p749) target = $region48
      $region47: #{stem_block3d_pallas.4} parent=43 // pred_region
        %vm752 = vcmask 7168
        %753 = vst.msk [vmem:[%s386] sm:$0xff] %vm752, 0.0
        %754 = vst.msk [vmem:[%s386 + $0x8] sm:$0xff] %vm752, 0.0
      $region48: #{stem_block3d_pallas.4} parent=43 // pred_fallthru
        _
      %v755 = vld [vmem:[%s386] sm:$0xff]
      %v756 = vld [vmem:[%s386 + $0x8] sm:$0xff]
      %v757 = vsel %vm745, %v743, 0.0
      %758 = vadd.xlane.f32.xlu0 %v757
      %v759 = vpop.xlane.xlu0 %758
      %v760 = vsel %vm745, %v744, 0.0
      %761 = vadd.xlane.f32.xlu0 %v760
      %v762 = vpop.xlane.xlu0 %761
      %v763 = vadd.f32 %v755, %v759
      %v764 = vadd.f32 %v756, %v762
      %vm765 = vcmask 7168
      %766 = vst.msk [vmem:[%s386] sm:$0xff] %vm765, %v763
      %767 = vst.msk [vmem:[%s386 + $0x8] sm:$0xff] %vm765, %v764
      %s768 = sadd.s32 %s25, %s26
      %p769 = scmp.lt.s32.totalorder %s24, 1
      %s770 = scalar_select %p769, %s24, 1
      %p771 = scmp.lt.s32.totalorder %s768, 0
      %s772 = scalar_select %p771, %s768, 0
      %s773 = smul.addr %s770, 2
      %s774 = sadd.s32 %s772, %s773
      %s775 = smul.addr %s774, 8
      %s776 = scalar_lea.vmem %s6, %s775
      %p777 = scmp.lt.s32.totalorder %s24, 1
      %s778 = scalar_select %p777, %s24, 1
      %p779 = scmp.lt.s32.totalorder %s25, 0
      %s780 = scalar_select %p779, %s25, 0
      %s781 = smul.addr %s780, 2
      %s782 = smul.addr %s778, 2
      %s783 = sadd.s32 %s781, %s782
      %s784 = smul.addr %s783, 8
      %s785 = scalar_lea.vmem %s7, %s784
      // Predicated region
      $region49: #{stem_block3d_pallas.4} parent=43 // pred_check
        %p786 = pneg %p204
      $region50: #{stem_block3d_pallas.4} parent=43 // pred_check_branch
        %788 = sbr.rel (%p786) target = $region52
      $region51: #{stem_block3d_pallas.4} parent=43 // pred_region
        %s789 = sadd.s32 %s25, %s26
      $region52: #{stem_block3d_pallas.4} parent=43 // pred_fallthru
        _
      // Predicated region
      $region53: #{stem_block3d_pallas.4} parent=43 // pred_check
        %p790 = pneg %p232
      $region54: #{stem_block3d_pallas.4} parent=43 // pred_check_branch
        %792 = sbr.rel (%p790) target = $region56
      $region55: #{stem_block3d_pallas.4} parent=43 // pred_region
        _
      $region56: #{stem_block3d_pallas.4} parent=43 // pred_fallthru
        _
    $region44: #{stem_block3d_pallas.4} parent=5 // pred_fallthru
      _
    %p793 = scmp.le.s32.totalorder 2, %s14
    // Predicated region
    $region57: #{stem_block3d_pallas.4} parent=5 // pred_check
      %p794 = pneg %p793
    $region58: #{stem_block3d_pallas.4} parent=5 // pred_check_branch
      %796 = sbr.rel (%p794) target = $region60
    $region59: #{stem_block3d_pallas.4} parent=5 // pred_region
      %s797 = ssub.s32 %s14, 2
      // Predicated region
      $region61: #{stem_block3d_pallas.4} parent=59 // pred_check
        %p798 = pneg %p210
      $region62: #{stem_block3d_pallas.4} parent=59 // pred_check_branch
        %800 = sbr.rel (%p798) target = $region64
      $region63: #{stem_block3d_pallas.4} parent=59 // pred_region
        %s801 = sadd.s32 %s28, %s29
        %p802 = scmp.lt.s32.totalorder %s27, 1
        %s803 = scalar_select %p802, %s27, 1
        %p804 = scmp.lt.s32.totalorder %s801, 0
        %s805 = scalar_select %p804, %s801, 0
        %s806 = smul.addr %s803, 2
        %s807 = sadd.s32 %s805, %s806
        %s808 = smul.addr %s807, 8
        %s809 = scalar_lea.vmem %s6, %s808
      $region64: #{stem_block3d_pallas.4} parent=59 // pred_fallthru
        _
      // Predicated region
      $region65: #{stem_block3d_pallas.4} parent=59 // pred_check
        %p810 = pneg %p238
      $region66: #{stem_block3d_pallas.4} parent=59 // pred_check_branch
        %812 = sbr.rel (%p810) target = $region68
      $region67: #{stem_block3d_pallas.4} parent=59 // pred_region
        %p813 = scmp.lt.s32.totalorder %s27, 1
        %s814 = scalar_select %p813, %s27, 1
        %p815 = scmp.lt.s32.totalorder %s28, 0
        %s816 = scalar_select %p815, %s28, 0
        %s817 = smul.addr %s816, 2
        %s818 = smul.addr %s814, 2
        %s819 = sadd.s32 %s817, %s818
        %s820 = smul.addr %s819, 8
        %s821 = scalar_lea.vmem %s7, %s820
      $region68: #{stem_block3d_pallas.4} parent=59 // pred_fallthru
        _
    $region60: #{stem_block3d_pallas.4} parent=5 // pred_fallthru
      _
  $region6: #{stem_block3d_pallas.4} parent=0 // loop_footer
    %s18 = sadd.s32 1, %s14
  $region7: #{stem_block3d_pallas.4} parent=0 // loop_footer_branch
    %13 = sbr.rel target = $region3
  $region8: #{stem_block3d_pallas.4} parent=0 // loop_exit
    _

// kernel: stem_block3d_pallas.5
$region0: #{stem_block3d_pallas.5}
  #allocation0 [shape = 'u32[]', space=smem, size = 0x4, offset = 0x4, fixed_abs, tag = 'smem constant byte address 0x4 - core index']
  #allocation1 [shape = 'u32[72,128]{1,0:T(1,128)}', space=vmem, size = 0x9000, scoped, tag = 'internal scratch']
  %s0 = inlined_call_operand.vmem [shape: f32[2,16,64], index: 0, kind: input, shape index: {}]
  %s1 = inlined_call_operand.vmem [shape: f32[2,16,1], index: 1, kind: input, shape index: {}]
  %s2 = inlined_call_operand.vmem [shape: f32[2,16,64], index: 2, kind: output, shape index: {}]
  %s3 = sld [smem:[#allocation0]]
  $region41: #{stem_block3d_pallas.5} parent=0
    _
  %s5 = ssub.s32 1, %s3
  %s6 = scalar_select 0, %s5, %s3
  loop: start=0, step=1, limit=4
  $region2: #{stem_block3d_pallas.5} parent=0 // loop_pre_header
    _
  $region3: #{stem_block3d_pallas.5} parent=0 // loop_header
    %s8 = sphi 0, %s12
    %p9 = scmp.ge.s32.totalorder %s8, 4
    %s15 = sphi 0, %s27
    %s16 = sphi 0, %s23
    %s17 = sphi 0, %s15
    %s18 = sphi 0, %s16
    %s19 = sphi 0, %s17
    %s20 = sphi 0, %s18
    %s32 = sphi 0, %s34
    %s35 = sphi 0, %s32
    %s36 = sphi 0, %s35
    %s52 = sphi 0, %s36
    %s58 = sphi 0, %s60
    %s61 = sphi 0, %s58
    %s62 = sphi 0, %s61
    %s78 = sphi 0, %s62
    %s86 = sphi 0, %s88
    %s89 = sphi 0, %s86
    %s90 = sphi 0, %s89
    %s106 = sphi 0, %s90
  $region4: #{stem_block3d_pallas.5} parent=0 // loop_header_branch
    %11 = sbr.rel (%p9) target = $region8
  $region5: #{stem_block3d_pallas.5} parent=0 // loop_body
    %s13 = ssub.s32 %s8, 1
    %s14 = ssub.s32 %s8, 2
    %s21 = sadd.s32 1, %s16
    %p22 = scmp.ge.s32.totalorder %s21, 1
    %s23 = scalar_select %p22, 0, %s21
    %s24 = sadd.s32 1, %s15
    %s25 = scalar_select %p22, %s24, %s15
    %p26 = scmp.ge.s32.totalorder %s25, 2
    %s27 = scalar_select %p26, 0, %s25
    %s28 = ssub.s32 %s15, %s27
    %s29 = ssub.s32 %s16, %s23
    %s30 = sor.u32 %s28, %s29
    %p31 = scmp.eq.s32.totalorder %s30, 0
    %s33 = sadd.s32 %s32, 1
    %s34 = scalar_select %p31, %s32, %s33
    %p37 = pneg %p31
    %p38 = scmp.eq.s32.totalorder %s8, 1
    %p39 = por %p37, %p38
    %p40 = scmp.ne.s32.totalorder %s32, %s35
    %p41 = scmp.eq.s32.totalorder %s8, 0
    %p42 = por %p40, %p41
    %p43 = scmp.ne.s32.totalorder %s32, %s35
    %p44 = scmp.eq.s32.totalorder %s13, 1
    %p45 = por %p43, %p44
    %p46 = scmp.ne.s32.totalorder %s35, %s36
    %p47 = scmp.eq.s32.totalorder %s13, 0
    %p48 = por %p46, %p47
    %p49 = scmp.ne.s32.totalorder %s35, %s36
    %p50 = scmp.eq.s32.totalorder %s14, 1
    %p51 = por %p49, %p50
    %p53 = scmp.ne.s32.totalorder %s36, %s52
    %p54 = scmp.eq.s32.totalorder %s14, 0
    %p55 = por %p53, %p54
    %s56 = ssub.s32 %s15, %s27
    %p57 = scmp.eq.s32.totalorder %s56, 0
    %s59 = sadd.s32 %s58, 1
    %s60 = scalar_select %p57, %s58, %s59
    %p63 = pneg %p57
    %p64 = scmp.eq.s32.totalorder %s8, 1
    %p65 = por %p63, %p64
    %p66 = scmp.ne.s32.totalorder %s58, %s61
    %p67 = scmp.eq.s32.totalorder %s8, 0
    %p68 = por %p66, %p67
    %p69 = scmp.ne.s32.totalorder %s58, %s61
    %p70 = scmp.eq.s32.totalorder %s13, 1
    %p71 = por %p69, %p70
    %p72 = scmp.ne.s32.totalorder %s61, %s62
    %p73 = scmp.eq.s32.totalorder %s13, 0
    %p74 = por %p72, %p73
    %p75 = scmp.ne.s32.totalorder %s61, %s62
    %p76 = scmp.eq.s32.totalorder %s14, 1
    %p77 = por %p75, %p76
    %p79 = scmp.ne.s32.totalorder %s62, %s78
    %p80 = scmp.eq.s32.totalorder %s14, 0
    %p81 = por %p79, %p80
    %s82 = ssub.s32 %s15, %s27
    %s83 = ssub.s32 %s16, %s23
    %s84 = sor.u32 %s82, %s83
    %p85 = scmp.eq.s32.totalorder %s84, 0
    %s87 = sadd.s32 %s86, 1
    %s88 = scalar_select %p85, %s86, %s87
    %p91 = pneg %p85
    %p92 = scmp.eq.s32.totalorder %s8, 1
    %p93 = por %p91, %p92
    %p94 = scmp.ne.s32.totalorder %s86, %s89
    %p95 = scmp.eq.s32.totalorder %s8, 0
    %p96 = por %p94, %p95
    %p97 = scmp.ne.s32.totalorder %s86, %s89
    %p98 = scmp.eq.s32.totalorder %s13, 1
    %p99 = por %p97, %p98
    %p100 = scmp.ne.s32.totalorder %s89, %s90
    %p101 = scmp.eq.s32.totalorder %s13, 0
    %p102 = por %p100, %p101
    %p103 = scmp.ne.s32.totalorder %s89, %s90
    %p104 = scmp.eq.s32.totalorder %s14, 1
    %p105 = por %p103, %p104
    %p107 = scmp.ne.s32.totalorder %s90, %s106
    %p108 = scmp.eq.s32.totalorder %s14, 0
    %p109 = por %p107, %p108
    %p110 = scmp.le.s32.totalorder 1, %s8
    %p111 = scmp.lt.s32.totalorder %s8, 3
    %p112 = pnand %p110, %p111
    %p113 = pneg %p112
    // Predicated region
    $region9: #{stem_block3d_pallas.5} parent=5 // pred_check
      _
    $region10: #{stem_block3d_pallas.5} parent=5 // pred_check_branch
      %115 = sbr.rel (%p112) target = $region12
    $region11: #{stem_block3d_pallas.5} parent=5 // pred_region
      %s116 = ssub.s32 %s8, 1
    $region12: #{stem_block3d_pallas.5} parent=5 // pred_fallthru
      _
    %p117 = scmp.lt.s32.totalorder %s8, 2
    // Predicated region
    $region13: #{stem_block3d_pallas.5} parent=5 // pred_check
      %p118 = pneg %p117
    $region14: #{stem_block3d_pallas.5} parent=5 // pred_check_branch
      %120 = sbr.rel (%p118) target = $region16
    $region15: #{stem_block3d_pallas.5} parent=5 // pred_region
      // Predicated region
      $region17: #{stem_block3d_pallas.5} parent=15 // pred_check
        %p121 = pneg %p42
      $region18: #{stem_block3d_pallas.5} parent=15 // pred_check_branch
        %123 = sbr.rel (%p121) target = $region20
      $region19: #{stem_block3d_pallas.5} parent=15 // pred_region
        %p124 = scmp.lt.s32.totalorder %s15, 1
        %s125 = scalar_select %p124, %s15, 1
        %p126 = scmp.lt.s32.totalorder %s16, 0
        %s127 = scalar_select %p126, %s16, 0
        %s128 = smul.addr %s125, 2
        %s129 = sadd.s32 %s127, %s128
        %s130 = smul.addr %s129, 8
        %s131 = scalar_lea.vmem %s0, %s130
      $region20: #{stem_block3d_pallas.5} parent=15 // pred_fallthru
        _
      // Predicated region
      $region21: #{stem_block3d_pallas.5} parent=15 // pred_check
        %p132 = pneg %p68
      $region22: #{stem_block3d_pallas.5} parent=15 // pred_check_branch
        %134 = sbr.rel (%p132) target = $region24
      $region23: #{stem_block3d_pallas.5} parent=15 // pred_region
        %p135 = scmp.lt.s32.totalorder %s15, 1
        %s136 = scalar_select %p135, %s15, 1
        %s137 = smul.addr %s136, 2
        %s138 = smul.addr %s137, 8
        %s139 = scalar_lea.vmem %s1, %s138
      $region24: #{stem_block3d_pallas.5} parent=15 // pred_fallthru
        _
    $region16: #{stem_block3d_pallas.5} parent=5 // pred_fallthru
      _
    %p140 = scmp.le.s32.totalorder 1, %s8
    %p141 = scmp.lt.s32.totalorder %s8, 3
    %p142 = pnand %p140, %p141
    %p143 = pneg %p142
    // Predicated region
    $region25: #{stem_block3d_pallas.5} parent=5 // pred_check
      _
    $region26: #{stem_block3d_pallas.5} parent=5 // pred_check_branch
      %145 = sbr.rel (%p142) target = $region28
    $region27: #{stem_block3d_pallas.5} parent=5 // pred_region
      %s146 = ssub.s32 %s8, 1
      %p147 = scmp.lt.s32.totalorder %s17, 1
      %s148 = scalar_select %p147, %s17, 1
      %p149 = scmp.lt.s32.totalorder %s18, 0
      %s150 = scalar_select %p149, %s18, 0
      %s151 = smul.addr %s148, 2
      %s152 = sadd.s32 %s150, %s151
      %s153 = smul.addr %s152, 8
      %s154 = scalar_lea.vmem %s0, %s153
      %p155 = pneg %p48
      %p156 = pneg %p45
      %p157 = scmp.lt.s32.totalorder %s17, 1
      %s158 = scalar_select %p157, %s17, 1
      %s159 = smul.addr %s158, 2
      %s160 = smul.addr %s159, 8
      %s161 = scalar_lea.vmem %s1, %s160
      %p162 = pneg %p74
      %p163 = pneg %p71
      %p164 = pneg %p102
      %p165 = pneg %p99
      %p166 = scmp.lt.s32.totalorder %s17, 1
      %s167 = scalar_select %p166, %s17, 1
      %p168 = scmp.lt.s32.totalorder %s18, 0
      %s169 = scalar_select %p168, %s18, 0
      %s170 = smul.addr %s167, 2
      %s171 = sadd.s32 %s169, %s170
      %s172 = smul.addr %s171, 8
      %s173 = scalar_lea.vmem %s2, %s172
      %p174 = scmp.lt.s32.totalorder %s17, 1
      %s175 = scalar_select %p174, %s17, 1
      %p176 = scmp.lt.s32.totalorder %s18, 0
      %s177 = scalar_select %p176, %s18, 0
      %s178 = smul.addr %s175, 2
      %s179 = sadd.s32 %s177, %s178
      %s180 = smul.addr %s179, 8
      %s181 = scalar_lea.vmem %s0, %s180
      %p182 = scmp.lt.s32.totalorder %s17, 1
      %s183 = scalar_select %p182, %s17, 1
      %s184 = smul.addr %s183, 2
      %s185 = smul.addr %s184, 8
      %s186 = scalar_lea.vmem %s1, %s185
      %p187 = scmp.lt.s32.totalorder %s17, 1
      %s188 = scalar_select %p187, %s17, 1
      %p189 = scmp.lt.s32.totalorder %s18, 0
      %s190 = scalar_select %p189, %s18, 0
      %s191 = smul.addr %s188, 2
      %s192 = sadd.s32 %s190, %s191
      %s193 = smul.addr %s192, 8
      %s194 = scalar_lea.vmem %s2, %s193
      %v195 = vld [vmem:[%s181] sm:$0xff]
      %v196 = vld [vmem:[%s181 + $0x8] sm:$0xff]
      %v197 = vld [vmem:[%s186] sm:$0xff]
      %v198 = vld [vmem:[%s186 + $0x8] sm:$0xff]
      %200 = vset.pattern.permute.xlu0 0
      %201 = vperm.xlu0 %200, %v197
      %v202 = vpop.permute.xlu0 %201
      %205 = vset.pattern.permute.xlu0 0
      %206 = vperm.xlu0 %205, %v198
      %v207 = vpop.permute.xlu0 %206
      %v209 = vmul.f32 %v195, %v202
      %v210 = vmul.f32 %v196, %v207
      %vm211 = vcmask 523264
      %212 = vst.msk [vmem:[%s194] sm:$0xff] %vm211, %v209
      %213 = vst.msk [vmem:[%s194 + $0x8] sm:$0xff] %vm211, %v210
      %p214 = scmp.lt.s32.totalorder %s17, 1
      %s215 = scalar_select %p214, %s17, 1
      %p216 = scmp.lt.s32.totalorder %s18, 0
      %s217 = scalar_select %p216, %s18, 0
      %s218 = smul.addr %s215, 2
      %s219 = sadd.s32 %s217, %s218
      %s220 = smul.addr %s219, 8
      %s221 = scalar_lea.vmem %s2, %s220
      // Predicated region
      $region29: #{stem_block3d_pallas.5} parent=27 // pred_check
        %p222 = pneg %p99
      $region30: #{stem_block3d_pallas.5} parent=27 // pred_check_branch
        %224 = sbr.rel (%p222) target = $region32
      $region31: #{stem_block3d_pallas.5} parent=27 // pred_region
        _
      $region32: #{stem_block3d_pallas.5} parent=27 // pred_fallthru
        _
    $region28: #{stem_block3d_pallas.5} parent=5 // pred_fallthru
      _
    %p225 = scmp.le.s32.totalorder 2, %s8
    // Predicated region
    $region33: #{stem_block3d_pallas.5} parent=5 // pred_check
      %p226 = pneg %p225
    $region34: #{stem_block3d_pallas.5} parent=5 // pred_check_branch
      %228 = sbr.rel (%p226) target = $region36
    $region35: #{stem_block3d_pallas.5} parent=5 // pred_region
      %s229 = ssub.s32 %s8, 2
      // Predicated region
      $region37: #{stem_block3d_pallas.5} parent=35 // pred_check
        %p230 = pneg %p105
      $region38: #{stem_block3d_pallas.5} parent=35 // pred_check_branch
        %232 = sbr.rel (%p230) target = $region40
      $region39: #{stem_block3d_pallas.5} parent=35 // pred_region
        %p233 = scmp.lt.s32.totalorder %s19, 1
        %s234 = scalar_select %p233, %s19, 1
        %p235 = scmp.lt.s32.totalorder %s20, 0
        %s236 = scalar_select %p235, %s20, 0
        %s237 = smul.addr %s234, 2
        %s238 = sadd.s32 %s236, %s237
        %s239 = smul.addr %s238, 8
        %s240 = scalar_lea.vmem %s2, %s239
      $region40: #{stem_block3d_pallas.5} parent=35 // pred_fallthru
        _
    $region36: #{stem_block3d_pallas.5} parent=5 // pred_fallthru
      _
  $region6: #{stem_block3d_pallas.5} parent=0 // loop_footer
    %s12 = sadd.s32 1, %s8
  $region7: #{stem_block3d_pallas.5} parent=0 // loop_footer_branch
    %7 = sbr.rel target = $region3
  $region8: #{stem_block3d_pallas.5} parent=0 // loop_exit
    _

</llo_original>
